<compile_context>
chip_gen: v6e
topology: v6e:2x2x1
jax: 0.10.0
libtpu: 0.0.40
codegen_flags: <defaults>
</compile_context>

<pallas_src>
import jax
import jax.numpy as jnp
from jax import lax
from jax.experimental import pallas as pl
from jax.experimental.pallas import tpu as pltpu


# ----------------------------------------------------------------------------
# Pallas kernels
# ----------------------------------------------------------------------------
def _conv_gemm_bn_stats_kernel(a_ref, w_ref, y_ref, ssum_ref, ssq_ref):
    """One (Cout, tm) tile of  W(Cout,K) @ A(K,tm)  + per-tile BN partial stats.

    Output layout is flipped: channels on sublanes, M = N*D*H*W on lanes, so
    stores are lane-dense and the MXU N dimension is wide.  Each grid step
    writes its own tiny (Cout, 1) partial sum / sum-of-squares block, so every
    grid axis is fully parallel (no cross-step accumulation carry).
    """
    y = lax.dot_general(
        w_ref[...], a_ref[...],
        dimension_numbers=(((1,), (0,)), ((), ())),
        preferred_element_type=jnp.float32)            # (Cout, tm), f32 acc
    y_ref[...] = y
    ssum_ref[...] = jnp.sum(y, axis=1, keepdims=True)
    ssq_ref[...] = jnp.sum(y * y, axis=1, keepdims=True)


def _bn_mish_kernel(y_ref, scale_ref, shift_ref, o_ref):
    """z = y*scale + shift  (folded BN affine);  out = z * tanh(softplus(z))."""
    z = y_ref[...] * scale_ref[...] + shift_ref[...]
    # numerically stable softplus (matches F.softplus incl. threshold behaviour)
    sp = jnp.maximum(z, 0.0) + jnp.log1p(jnp.exp(-jnp.abs(z)))
    o_ref[...] = (z * jnp.tanh(sp)).astype(o_ref.dtype)


# ----------------------------------------------------------------------------
# Tiling helper
# ----------------------------------------------------------------------------
def _pick_m_tile(m, bytes_per_col, vmem_budget=8 << 20, min_steps=2):
    """Largest divisor of m that fits the VMEM budget; prefer lane-dense tiles
    (multiples of 128) and >= min_steps grid steps (for megacore sharding)."""
    cap = max(128, vmem_budget // max(int(bytes_per_col), 1))
    limit = min(m, cap)
    divs = [d for d in range(1, limit + 1) if m % d == 0]
    if m <= cap:
        divs.append(m)
    divs = sorted(set(divs))
    lane_dense = [d for d in divs if d % 128 == 0]
    pool = lane_dense if lane_dense else divs
    best = max(pool)
    if m // best < min_steps:
        alts = [d for d in pool if m // d >= min_steps]
        if alts:
            best = max(alts)
    return best


# ----------------------------------------------------------------------------
# Conv3d (3x3x3, reflect pad, no bias) + fused BN batch statistics
# ----------------------------------------------------------------------------
def conv3d_reflect_bn_stats(x, w):
    """x: (N, Cin, D, H, W), w: (Cout, Cin, 3, 3, 3) f32.

    Returns (y, mean, var):
      y:    (N, Cout, D*H*W) f32  conv output, channels-first flat layout
      mean: (Cout,) / var: (Cout,)  training-mode batch stats (biased var),
    computed inside the same Pallas GEMM kernel (no extra pass over y).
    """
    N, Cin, D, H, W = x.shape
    Cout = w.shape[0]
    K = Cin * 27
    M = D * H * W

    # Reflect pad once in HBM, then build the im2col operand directly in the
    # flipped (K, M) channels-first layout, in bf16 (halves im2col bytes).
    # TODO(synk): for large volumes, replace this HBM im2col with in-kernel
    # patch construction from a halo'd VMEM slab (manual DMA + K-tiling) to
    # remove the 27x HBM inflation; kept XLA-side here for lowering robustness.
    xp = jnp.pad(x, ((0, 0), (0, 0), (1, 1), (1, 1), (1, 1)),
                 mode="reflect").astype(jnp.bfloat16)
    taps = [xp[:, :, kd:kd + D, kh:kh + H, kw:kw + W]
            for kd in range(3) for kh in range(3) for kw in range(3)]
    a = jnp.stack(taps, axis=2).reshape(N, K, M)        # k = c*27 + tap
    wf = w.reshape(Cout, K).astype(jnp.bfloat16)        # same (c, kd, kh, kw) order

    # A block (bf16, double-buffered) + streamed f32 y block per column.
    bytes_per_col = K * 2 * 2 + Cout * 4 * 2
    tm = _pick_m_tile(M, bytes_per_col, min_steps=(1 if N >= 2 else 2))
    J = M // tm
    grid = (N, J)

    cost = pl.CostEstimate(
        flops=2 * N * M * K * Cout,
        transcendentals=0,
        bytes_accessed=(a.size * 2 + wf.size * 2 + N * Cout * M * 4
                        + 2 * N * J * Cout * 4))

    y, ssum, ssq = pl.pallas_call(
        _conv_gemm_bn_stats_kernel,
        out_shape=(
            jax.ShapeDtypeStruct((N, Cout, M), jnp.float32),
            jax.ShapeDtypeStruct((N, J, Cout, 1), jnp.float32),
            jax.ShapeDtypeStruct((N, J, Cout, 1), jnp.float32),
        ),
        grid=grid,
        in_specs=[
            pl.BlockSpec((None, K, tm), lambda n, j: (n, 0, j)),
            pl.BlockSpec((Cout, K), lambda n, j: (0, 0)),
        ],
        out_specs=(
            pl.BlockSpec((None, Cout, tm), lambda n, j: (n, 0, j)),
            pl.BlockSpec((None, None, Cout, 1), lambda n, j: (n, j, 0, 0)),
            pl.BlockSpec((None, None, Cout, 1), lambda n, j: (n, j, 0, 0)),
        ),
        compiler_params=pltpu.CompilerParams(
            # Every grid step writes distinct blocks -> fully parallel grid
            # (megacore sharding on v7x).
            dimension_semantics=("parallel", "parallel"),
            vmem_limit_bytes=32 * 1024 * 1024),
        cost_estimate=cost,
    )(a, wf)

    cnt = float(N * M)
    mean = jnp.sum(ssum, axis=(0, 1))[:, 0] / cnt
    ex2 = jnp.sum(ssq, axis=(0, 1))[:, 0] / cnt
    var = jnp.maximum(ex2 - mean * mean, 0.0)            # biased (training fwd)
    # TODO(synk): running_mean/running_var buffer updates are not modeled
    # (they do not affect the training-mode forward output).
    return y, mean, var


# ----------------------------------------------------------------------------
# Fused BatchNorm(affine, batch stats) + Mish, on (N, C, M) channels-first-flat
# ----------------------------------------------------------------------------
def bn_mish_flat(y, mean, var, gamma, beta, eps=1e-5, out_dtype=jnp.float32):
    N, C, M = y.shape
    invstd = lax.rsqrt(var + eps)
    scale = (gamma * invstd).astype(jnp.float32).reshape(C, 1)
    shift = (beta - mean * gamma * invstd).astype(jnp.float32).reshape(C, 1)

    out_bytes = jnp.dtype(out_dtype).itemsize
    bytes_per_col = C * 4 * 2 + C * out_bytes * 2
    tm = _pick_m_tile(M, bytes_per_col, min_steps=(1 if N >= 2 else 2))
    grid = (N, M // tm)
    return pl.pallas_call(
        _bn_mish_kernel,
        out_shape=jax.ShapeDtypeStruct((N, C, M), out_dtype),
        grid=grid,
        in_specs=[
            pl.BlockSpec((None, C, tm), lambda n, j: (n, 0, j)),
            pl.BlockSpec((C, 1), lambda n, j: (0, 0)),
            pl.BlockSpec((C, 1), lambda n, j: (0, 0)),
        ],
        out_specs=pl.BlockSpec((None, C, tm), lambda n, j: (n, 0, j)),
        compiler_params=pltpu.CompilerParams(
            dimension_semantics=("parallel", "parallel"),
            vmem_limit_bytes=32 * 1024 * 1024),
    )(y, scale, shift)


# ----------------------------------------------------------------------------
# Trilinear upsample x2, align_corners=True (NCDHW)
# ----------------------------------------------------------------------------
def _interp_matrix(in_size, out_size):
    """Linear-interpolation matrix (in_size, out_size), align_corners=True."""
    if in_size == 1:
        return jnp.ones((1, out_size), jnp.float32)
    coords = (jnp.arange(out_size, dtype=jnp.float32)
              * (in_size - 1) / (out_size - 1))
    idx = jnp.arange(in_size, dtype=jnp.float32)[:, None]
    # hat function: weight of source i for output coordinate c is max(0,1-|i-c|)
    return jnp.maximum(0.0, 1.0 - jnp.abs(idx - coords[None, :]))


def trilinear_upsample_x2_align_corners(x):
    """x: (N, C, D, H, W) -> (N, C, 2D, 2H, 2W), align_corners=True.

    Implemented as three small dense interpolation matmuls (no gathers).
    TODO(synk): tiny vs. the convs, so kept in XLA rather than a Pallas kernel.
    """
    _, _, D, H, W = x.shape
    md = _interp_matrix(D, 2 * D)
    mh = _interp_matrix(H, 2 * H)
    mw = _interp_matrix(W, 2 * W)
    hp = lax.Precision.HIGHEST
    x = jnp.einsum("ncdhw,dp->ncphw", x, md, precision=hp)
    x = jnp.einsum("ncdhw,hp->ncdpw", x, mh, precision=hp)
    x = jnp.einsum("ncdhw,wp->ncdhp", x, mw, precision=hp)
    return x


# ----------------------------------------------------------------------------
# Up module (bilinear=True branch)
# ----------------------------------------------------------------------------
def init_up_params(key, in_channels, out_channels):
    mid = in_channels // 2
    k1, k2 = jax.random.split(key)
    return {
        "w1": 0.1 * jax.random.normal(k1, (mid, in_channels, 3, 3, 3), jnp.float32),
        "g1": jnp.ones((mid,), jnp.float32),
        "b1": jnp.zeros((mid,), jnp.float32),
        "w2": 0.1 * jax.random.normal(k2, (out_channels, mid, 3, 3, 3), jnp.float32),
        "g2": jnp.ones((out_channels,), jnp.float32),
        "b2": jnp.zeros((out_channels,), jnp.float32),
    }


@jax.jit
def up_forward(params, x1, x2):
    # Channels-first (PyTorch NCDHW) end-to-end: the only layout ops between
    # Pallas calls are free reshapes (flat (N,C,DHW) <-> (N,C,D,H,W)).
    x1u = trilinear_upsample_x2_align_corners(x1)
    x = jnp.concatenate([x2, x1u], axis=1)              # (N, Cin, D, H, W)
    N, _, D, H, W = x.shape

    y1, m1, v1 = conv3d_reflect_bn_stats(x, params["w1"])
    # Intermediate activation in bf16: it only feeds the bf16 im2col of conv2,
    # so the rounding is identical to casting later, at half the HBM traffic.
    h1 = bn_mish_flat(y1, m1, v1, params["g1"], params["b1"],
                      out_dtype=jnp.bfloat16)
    h1 = h1.reshape(N, params["w1"].shape[0], D, H, W)  # free reshape

    y2, m2, v2 = conv3d_reflect_bn_stats(h1, params["w2"])
    h2 = bn_mish_flat(y2, m2, v2, params["g2"], params["b2"],
                      out_dtype=jnp.float32)
    return h2.reshape(N, params["w2"].shape[0], D, H, W)


if __name__ == "__main__":
    key = jax.random.PRNGKey(0)
    kp, kx1, kx2 = jax.random.split(key, 3)

    in_channels, out_channels = 8, 8                    # Up(8, 8, bilinear=True)
    # x1 comes from the coarser level: in_channels//2 channels, half spatial.
    x1 = jax.random.normal(kx1, (1, in_channels // 2, 4, 4, 4), jnp.float32)
    # x2 is the skip connection at the upsampled resolution.
    x2 = jax.random.normal(kx2, (1, in_channels // 2, 8, 8, 8), jnp.float32)

    params = init_up_params(kp, in_channels, out_channels)
    out = jax.block_until_ready(up_forward(params, x1, x2))

    assert out.shape == (1, out_channels, 8, 8, 8), out.shape
    assert bool(jnp.all(jnp.isfinite(out)))
    print("KERNEL_OK")
</pallas_src>

<mosaic_0001>
module attributes {stable_mosaic.version = 11 : i64} {
  func.func @_conv_gemm_bn_stats_kernel(%arg0: i32, %arg1: i32, %arg2: memref<1x216x256xbf16, #tpu.memory_space<vmem>>, %arg3: memref<4x216xbf16, #tpu.memory_space<vmem>>, %arg4: memref<1x4x256xf32, #tpu.memory_space<vmem>>, %arg5: memref<1x1x4x1xf32, #tpu.memory_space<vmem>>, %arg6: memref<1x1x4x1xf32, #tpu.memory_space<vmem>>) attributes {dimension_semantics = [#tpu.dimension_semantics<parallel>, #tpu.dimension_semantics<parallel>], iteration_bounds = array<i64: 1, 2>, scalar_prefetch = 0 : i64, scratch_operands = 0 : i64, tpu.core_type = #tpu.core_type<tc>, window_params = [{transform_indices = @transform_0, window_bounds = array<i64: 1, 216, 256>}, {pipeline_mode = #tpu.pipeline_mode<synchronous>, transform_indices = @transform_1, window_bounds = array<i64: 4, 216>}, {transform_indices = @transform_2, window_bounds = array<i64: 1, 4, 256>}, {transform_indices = @transform_3, window_bounds = array<i64: 1, 1, 4, 1>}, {transform_indices = @transform_4, window_bounds = array<i64: 1, 1, 4, 1>}]} {
    %c0 = arith.constant 0 : index
    %c0_0 = arith.constant 0 : index
    %0 = vector.load %arg3[%c0, %c0_0] : memref<4x216xbf16, #tpu.memory_space<vmem>>, vector<4x216xbf16>
    %c0_1 = arith.constant 0 : index
    %c0_2 = arith.constant 0 : index
    %c0_3 = arith.constant 0 : index
    %1 = vector.load %arg2[%c0_1, %c0_2, %c0_3] : memref<1x216x256xbf16, #tpu.memory_space<vmem>>, vector<1x216x256xbf16>
    %2 = vector.shape_cast %1 : vector<1x216x256xbf16> to vector<216x256xbf16>
    %cst = arith.constant dense<0.000000e+00> : vector<4x256xf32>
    %3 = tpu.matmul %0, %2, %cst {dimension_numbers = #tpu.dot_dimension_numbers<[1], [0], [0], [1], [0, 0, 1, 1], [], []>} : vector<4x216xbf16>, vector<216x256xbf16>, vector<4x256xf32> -> vector<4x256xf32>
    %c0_4 = arith.constant 0 : index
    %c0_5 = arith.constant 0 : index
    %c0_6 = arith.constant 0 : index
    %4 = vector.load %arg4[%c0_4, %c0_5, %c0_6] : memref<1x4x256xf32, #tpu.memory_space<vmem>>, vector<1x4x256xf32>
    %5 = vector.shape_cast %4 : vector<1x4x256xf32> to vector<4x256xf32>
    %6 = vector.shape_cast %3 : vector<4x256xf32> to vector<1x4x256xf32>
    tpu.vector_store %arg4[%c0_4, %c0_5, %c0_6], %6 {strides = array<i32>} : memref<1x4x256xf32, #tpu.memory_space<vmem>>, vector<1x4x256xf32>,
    %cst_7 = arith.constant dense<0.000000e+00> : vector<4xf32>
    %7 = vector.multi_reduction <add>, %3, %cst_7 [1] : vector<4x256xf32> to vector<4xf32>
    %8 = vector.shape_cast %7 : vector<4xf32> to vector<4x1xf32>
    %c0_8 = arith.constant 0 : index
    %c0_9 = arith.constant 0 : index
    %c0_10 = arith.constant 0 : index
    %c0_11 = arith.constant 0 : index
    %9 = vector.load %arg5[%c0_8, %c0_9, %c0_10, %c0_11] : memref<1x1x4x1xf32, #tpu.memory_space<vmem>>, vector<1x1x4x1xf32>
    %10 = vector.shape_cast %9 : vector<1x1x4x1xf32> to vector<4x1xf32>
    %11 = vector.shape_cast %8 : vector<4x1xf32> to vector<1x1x4x1xf32>
    tpu.vector_store %arg5[%c0_8, %c0_9, %c0_10, %c0_11], %11 {strides = array<i32>} : memref<1x1x4x1xf32, #tpu.memory_space<vmem>>, vector<1x1x4x1xf32>,
    %12 = arith.mulf %3, %3 : vector<4x256xf32>
    %cst_12 = arith.constant dense<0.000000e+00> : vector<4xf32>
    %13 = vector.multi_reduction <add>, %12, %cst_12 [1] : vector<4x256xf32> to vector<4xf32>
    %14 = vector.shape_cast %13 : vector<4xf32> to vector<4x1xf32>
    %c0_13 = arith.constant 0 : index
    %c0_14 = arith.constant 0 : index
    %c0_15 = arith.constant 0 : index
    %c0_16 = arith.constant 0 : index
    %15 = vector.load %arg6[%c0_13, %c0_14, %c0_15, %c0_16] : memref<1x1x4x1xf32, #tpu.memory_space<vmem>>, vector<1x1x4x1xf32>
    %16 = vector.shape_cast %15 : vector<1x1x4x1xf32> to vector<4x1xf32>
    %17 = vector.shape_cast %14 : vector<4x1xf32> to vector<1x1x4x1xf32>
    tpu.vector_store %arg6[%c0_13, %c0_14, %c0_15, %c0_16], %17 {strides = array<i32>} : memref<1x1x4x1xf32, #tpu.memory_space<vmem>>, vector<1x1x4x1xf32>,
    return
  }
  func.func @transform_0(%arg0: i32, %arg1: i32) -> (i32, i32, i32) {
    %c0_i32 = arith.constant 0 : i32
    %c0_i32_0 = arith.constant 0 : i32
    return %arg0, %c0_i32, %arg1 : i32, i32, i32
  }
  func.func @transform_1(%arg0: i32, %arg1: i32) -> (i32, i32) {
    %c0_i32 = arith.constant 0 : i32
    %c0_i32_0 = arith.constant 0 : i32
    %c0_i32_1 = arith.constant 0 : i32
    return %c0_i32, %c0_i32_0 : i32, i32
  }
  func.func @transform_2(%arg0: i32, %arg1: i32) -> (i32, i32, i32) {
    %c0_i32 = arith.constant 0 : i32
    %c0_i32_0 = arith.constant 0 : i32
    return %arg0, %c0_i32, %arg1 : i32, i32, i32
  }
  func.func @transform_3(%arg0: i32, %arg1: i32) -> (i32, i32, i32, i32) {
    %c0_i32 = arith.constant 0 : i32
    %c0_i32_0 = arith.constant 0 : i32
    %c0_i32_1 = arith.constant 0 : i32
    return %arg0, %arg1, %c0_i32, %c0_i32_0 : i32, i32, i32, i32
  }
  func.func @transform_4(%arg0: i32, %arg1: i32) -> (i32, i32, i32, i32) {
    %c0_i32 = arith.constant 0 : i32
    %c0_i32_0 = arith.constant 0 : i32
    %c0_i32_1 = arith.constant 0 : i32
    return %arg0, %arg1, %c0_i32, %c0_i32_0 : i32, i32, i32, i32
  }
}

module attributes {stable_mosaic.version = 11 : i64} {
  func.func @_bn_mish_kernel(%arg0: i32, %arg1: i32, %arg2: memref<1x4x256xf32, #tpu.memory_space<vmem>>, %arg3: memref<4x1xf32, #tpu.memory_space<vmem>>, %arg4: memref<4x1xf32, #tpu.memory_space<vmem>>, %arg5: memref<1x4x256xbf16, #tpu.memory_space<vmem>>) attributes {dimension_semantics = [#tpu.dimension_semantics<parallel>, #tpu.dimension_semantics<parallel>], iteration_bounds = array<i64: 1, 2>, scalar_prefetch = 0 : i64, scratch_operands = 0 : i64, tpu.core_type = #tpu.core_type<tc>, window_params = [{transform_indices = @transform_0, window_bounds = array<i64: 1, 4, 256>}, {pipeline_mode = #tpu.pipeline_mode<synchronous>, transform_indices = @transform_1, window_bounds = array<i64: 4, 1>}, {pipeline_mode = #tpu.pipeline_mode<synchronous>, transform_indices = @transform_2, window_bounds = array<i64: 4, 1>}, {transform_indices = @transform_3, window_bounds = array<i64: 1, 4, 256>}]} {
    %c0 = arith.constant 0 : index
    %c0_0 = arith.constant 0 : index
    %c0_1 = arith.constant 0 : index
    %0 = vector.load %arg2[%c0, %c0_0, %c0_1] : memref<1x4x256xf32, #tpu.memory_space<vmem>>, vector<1x4x256xf32>
    %1 = vector.shape_cast %0 : vector<1x4x256xf32> to vector<4x256xf32>
    %c0_2 = arith.constant 0 : index
    %c0_3 = arith.constant 0 : index
    %2 = vector.load %arg3[%c0_2, %c0_3] : memref<4x1xf32, #tpu.memory_space<vmem>>, vector<4x1xf32>
    %3 = vector.broadcast %2 : vector<4x1xf32> to vector<4x256xf32>
    %4 = arith.mulf %1, %3 : vector<4x256xf32>
    %c0_4 = arith.constant 0 : index
    %c0_5 = arith.constant 0 : index
    %5 = vector.load %arg4[%c0_4, %c0_5] : memref<4x1xf32, #tpu.memory_space<vmem>>, vector<4x1xf32>
    %6 = vector.broadcast %5 : vector<4x1xf32> to vector<4x256xf32>
    %7 = arith.addf %4, %6 : vector<4x256xf32>
    %cst = arith.constant 0.000000e+00 : f32
    %8 = vector.broadcast %cst : f32 to vector<4x256xf32>
    %9 = arith.maximumf %7, %8 : vector<4x256xf32>
    %10 = math.absf %7 : vector<4x256xf32>
    %cst_6 = arith.constant 0.000000e+00 : f32
    %11 = vector.broadcast %cst_6 : f32 to vector<4x256xf32>
    %12 = arith.subf %11, %10 : vector<4x256xf32>
    %13 = math.exp %12 : vector<4x256xf32>
    %14 = math.log1p %13 : vector<4x256xf32>
    %15 = arith.addf %9, %14 : vector<4x256xf32>
    %16 = math.tanh %15 : vector<4x256xf32>
    %17 = arith.mulf %7, %16 : vector<4x256xf32>
    %18 = arith.truncf %17 : vector<4x256xf32> to vector<4x256xbf16>
    %c0_7 = arith.constant 0 : index
    %c0_8 = arith.constant 0 : index
    %c0_9 = arith.constant 0 : index
    %19 = vector.load %arg5[%c0_7, %c0_8, %c0_9] : memref<1x4x256xbf16, #tpu.memory_space<vmem>>, vector<1x4x256xbf16>
    %20 = vector.shape_cast %19 : vector<1x4x256xbf16> to vector<4x256xbf16>
    %21 = vector.shape_cast %18 : vector<4x256xbf16> to vector<1x4x256xbf16>
    tpu.vector_store %arg5[%c0_7, %c0_8, %c0_9], %21 {strides = array<i32>} : memref<1x4x256xbf16, #tpu.memory_space<vmem>>, vector<1x4x256xbf16>,
    return
  }
  func.func @transform_0(%arg0: i32, %arg1: i32) -> (i32, i32, i32) {
    %c0_i32 = arith.constant 0 : i32
    %c0_i32_0 = arith.constant 0 : i32
    return %arg0, %c0_i32, %arg1 : i32, i32, i32
  }
  func.func @transform_1(%arg0: i32, %arg1: i32) -> (i32, i32) {
    %c0_i32 = arith.constant 0 : i32
    %c0_i32_0 = arith.constant 0 : i32
    %c0_i32_1 = arith.constant 0 : i32
    return %c0_i32, %c0_i32_0 : i32, i32
  }
  func.func @transform_2(%arg0: i32, %arg1: i32) -> (i32, i32) {
    %c0_i32 = arith.constant 0 : i32
    %c0_i32_0 = arith.constant 0 : i32
    %c0_i32_1 = arith.constant 0 : i32
    return %c0_i32, %c0_i32_0 : i32, i32
  }
  func.func @transform_3(%arg0: i32, %arg1: i32) -> (i32, i32, i32) {
    %c0_i32 = arith.constant 0 : i32
    %c0_i32_0 = arith.constant 0 : i32
    return %arg0, %c0_i32, %arg1 : i32, i32, i32
  }
}

module attributes {stable_mosaic.version = 11 : i64} {
  func.func @_conv_gemm_bn_stats_kernel(%arg0: i32, %arg1: i32, %arg2: memref<1x108x256xbf16, #tpu.memory_space<vmem>>, %arg3: memref<8x108xbf16, #tpu.memory_space<vmem>>, %arg4: memref<1x8x256xf32, #tpu.memory_space<vmem>>, %arg5: memref<1x1x8x1xf32, #tpu.memory_space<vmem>>, %arg6: memref<1x1x8x1xf32, #tpu.memory_space<vmem>>) attributes {dimension_semantics = [#tpu.dimension_semantics<parallel>, #tpu.dimension_semantics<parallel>], iteration_bounds = array<i64: 1, 2>, scalar_prefetch = 0 : i64, scratch_operands = 0 : i64, tpu.core_type = #tpu.core_type<tc>, window_params = [{transform_indices = @transform_0, window_bounds = array<i64: 1, 108, 256>}, {pipeline_mode = #tpu.pipeline_mode<synchronous>, transform_indices = @transform_1, window_bounds = array<i64: 8, 108>}, {transform_indices = @transform_2, window_bounds = array<i64: 1, 8, 256>}, {transform_indices = @transform_3, window_bounds = array<i64: 1, 1, 8, 1>}, {transform_indices = @transform_4, window_bounds = array<i64: 1, 1, 8, 1>}]} {
    %c0 = arith.constant 0 : index
    %c0_0 = arith.constant 0 : index
    %0 = vector.load %arg3[%c0, %c0_0] : memref<8x108xbf16, #tpu.memory_space<vmem>>, vector<8x108xbf16>
    %c0_1 = arith.constant 0 : index
    %c0_2 = arith.constant 0 : index
    %c0_3 = arith.constant 0 : index
    %1 = vector.load %arg2[%c0_1, %c0_2, %c0_3] : memref<1x108x256xbf16, #tpu.memory_space<vmem>>, vector<1x108x256xbf16>
    %2 = vector.shape_cast %1 : vector<1x108x256xbf16> to vector<108x256xbf16>
    %cst = arith.constant dense<0.000000e+00> : vector<8x256xf32>
    %3 = tpu.matmul %0, %2, %cst {dimension_numbers = #tpu.dot_dimension_numbers<[1], [0], [0], [1], [0, 0, 1, 1], [], []>} : vector<8x108xbf16>, vector<108x256xbf16>, vector<8x256xf32> -> vector<8x256xf32>
    %c0_4 = arith.constant 0 : index
    %c0_5 = arith.constant 0 : index
    %c0_6 = arith.constant 0 : index
    %4 = vector.load %arg4[%c0_4, %c0_5, %c0_6] : memref<1x8x256xf32, #tpu.memory_space<vmem>>, vector<1x8x256xf32>
    %5 = vector.shape_cast %4 : vector<1x8x256xf32> to vector<8x256xf32>
    %6 = vector.shape_cast %3 : vector<8x256xf32> to vector<1x8x256xf32>
    tpu.vector_store %arg4[%c0_4, %c0_5, %c0_6], %6 {strides = array<i32>} : memref<1x8x256xf32, #tpu.memory_space<vmem>>, vector<1x8x256xf32>,
    %cst_7 = arith.constant dense<0.000000e+00> : vector<8xf32>
    %7 = vector.multi_reduction <add>, %3, %cst_7 [1] : vector<8x256xf32> to vector<8xf32>
    %8 = vector.shape_cast %7 : vector<8xf32> to vector<8x1xf32>
    %c0_8 = arith.constant 0 : index
    %c0_9 = arith.constant 0 : index
    %c0_10 = arith.constant 0 : index
    %c0_11 = arith.constant 0 : index
    %9 = vector.load %arg5[%c0_8, %c0_9, %c0_10, %c0_11] : memref<1x1x8x1xf32, #tpu.memory_space<vmem>>, vector<1x1x8x1xf32>
    %10 = vector.shape_cast %9 : vector<1x1x8x1xf32> to vector<8x1xf32>
    %11 = vector.shape_cast %8 : vector<8x1xf32> to vector<1x1x8x1xf32>
    tpu.vector_store %arg5[%c0_8, %c0_9, %c0_10, %c0_11], %11 {strides = array<i32>} : memref<1x1x8x1xf32, #tpu.memory_space<vmem>>, vector<1x1x8x1xf32>,
    %12 = arith.mulf %3, %3 : vector<8x256xf32>
    %cst_12 = arith.constant dense<0.000000e+00> : vector<8xf32>
    %13 = vector.multi_reduction <add>, %12, %cst_12 [1] : vector<8x256xf32> to vector<8xf32>
    %14 = vector.shape_cast %13 : vector<8xf32> to vector<8x1xf32>
    %c0_13 = arith.constant 0 : index
    %c0_14 = arith.constant 0 : index
    %c0_15 = arith.constant 0 : index
    %c0_16 = arith.constant 0 : index
    %15 = vector.load %arg6[%c0_13, %c0_14, %c0_15, %c0_16] : memref<1x1x8x1xf32, #tpu.memory_space<vmem>>, vector<1x1x8x1xf32>
    %16 = vector.shape_cast %15 : vector<1x1x8x1xf32> to vector<8x1xf32>
    %17 = vector.shape_cast %14 : vector<8x1xf32> to vector<1x1x8x1xf32>
    tpu.vector_store %arg6[%c0_13, %c0_14, %c0_15, %c0_16], %17 {strides = array<i32>} : memref<1x1x8x1xf32, #tpu.memory_space<vmem>>, vector<1x1x8x1xf32>,
    return
  }
  func.func @transform_0(%arg0: i32, %arg1: i32) -> (i32, i32, i32) {
    %c0_i32 = arith.constant 0 : i32
    %c0_i32_0 = arith.constant 0 : i32
    return %arg0, %c0_i32, %arg1 : i32, i32, i32
  }
  func.func @transform_1(%arg0: i32, %arg1: i32) -> (i32, i32) {
    %c0_i32 = arith.constant 0 : i32
    %c0_i32_0 = arith.constant 0 : i32
    %c0_i32_1 = arith.constant 0 : i32
    return %c0_i32, %c0_i32_0 : i32, i32
  }
  func.func @transform_2(%arg0: i32, %arg1: i32) -> (i32, i32, i32) {
    %c0_i32 = arith.constant 0 : i32
    %c0_i32_0 = arith.constant 0 : i32
    return %arg0, %c0_i32, %arg1 : i32, i32, i32
  }
  func.func @transform_3(%arg0: i32, %arg1: i32) -> (i32, i32, i32, i32) {
    %c0_i32 = arith.constant 0 : i32
    %c0_i32_0 = arith.constant 0 : i32
    %c0_i32_1 = arith.constant 0 : i32
    return %arg0, %arg1, %c0_i32, %c0_i32_0 : i32, i32, i32, i32
  }
  func.func @transform_4(%arg0: i32, %arg1: i32) -> (i32, i32, i32, i32) {
    %c0_i32 = arith.constant 0 : i32
    %c0_i32_0 = arith.constant 0 : i32
    %c0_i32_1 = arith.constant 0 : i32
    return %arg0, %arg1, %c0_i32, %c0_i32_0 : i32, i32, i32, i32
  }
}

module attributes {stable_mosaic.version = 11 : i64} {
  func.func @_bn_mish_kernel(%arg0: i32, %arg1: i32, %arg2: memref<1x8x256xf32, #tpu.memory_space<vmem>>, %arg3: memref<8x1xf32, #tpu.memory_space<vmem>>, %arg4: memref<8x1xf32, #tpu.memory_space<vmem>>, %arg5: memref<1x8x256xf32, #tpu.memory_space<vmem>>) attributes {dimension_semantics = [#tpu.dimension_semantics<parallel>, #tpu.dimension_semantics<parallel>], iteration_bounds = array<i64: 1, 2>, scalar_prefetch = 0 : i64, scratch_operands = 0 : i64, tpu.core_type = #tpu.core_type<tc>, window_params = [{transform_indices = @transform_0, window_bounds = array<i64: 1, 8, 256>}, {pipeline_mode = #tpu.pipeline_mode<synchronous>, transform_indices = @transform_1, window_bounds = array<i64: 8, 1>}, {pipeline_mode = #tpu.pipeline_mode<synchronous>, transform_indices = @transform_2, window_bounds = array<i64: 8, 1>}, {transform_indices = @transform_3, window_bounds = array<i64: 1, 8, 256>}]} {
    %c0 = arith.constant 0 : index
    %c0_0 = arith.constant 0 : index
    %c0_1 = arith.constant 0 : index
    %0 = vector.load %arg2[%c0, %c0_0, %c0_1] : memref<1x8x256xf32, #tpu.memory_space<vmem>>, vector<1x8x256xf32>
    %1 = vector.shape_cast %0 : vector<1x8x256xf32> to vector<8x256xf32>
    %c0_2 = arith.constant 0 : index
    %c0_3 = arith.constant 0 : index
    %2 = vector.load %arg3[%c0_2, %c0_3] : memref<8x1xf32, #tpu.memory_space<vmem>>, vector<8x1xf32>
    %3 = vector.broadcast %2 : vector<8x1xf32> to vector<8x256xf32>
    %4 = arith.mulf %1, %3 : vector<8x256xf32>
    %c0_4 = arith.constant 0 : index
    %c0_5 = arith.constant 0 : index
    %5 = vector.load %arg4[%c0_4, %c0_5] : memref<8x1xf32, #tpu.memory_space<vmem>>, vector<8x1xf32>
    %6 = vector.broadcast %5 : vector<8x1xf32> to vector<8x256xf32>
    %7 = arith.addf %4, %6 : vector<8x256xf32>
    %cst = arith.constant 0.000000e+00 : f32
    %8 = vector.broadcast %cst : f32 to vector<8x256xf32>
    %9 = arith.maximumf %7, %8 : vector<8x256xf32>
    %10 = math.absf %7 : vector<8x256xf32>
    %cst_6 = arith.constant 0.000000e+00 : f32
    %11 = vector.broadcast %cst_6 : f32 to vector<8x256xf32>
    %12 = arith.subf %11, %10 : vector<8x256xf32>
    %13 = math.exp %12 : vector<8x256xf32>
    %14 = math.log1p %13 : vector<8x256xf32>
    %15 = arith.addf %9, %14 : vector<8x256xf32>
    %16 = math.tanh %15 : vector<8x256xf32>
    %17 = arith.mulf %7, %16 : vector<8x256xf32>
    %c0_7 = arith.constant 0 : index
    %c0_8 = arith.constant 0 : index
    %c0_9 = arith.constant 0 : index
    %18 = vector.load %arg5[%c0_7, %c0_8, %c0_9] : memref<1x8x256xf32, #tpu.memory_space<vmem>>, vector<1x8x256xf32>
    %19 = vector.shape_cast %18 : vector<1x8x256xf32> to vector<8x256xf32>
    %20 = vector.shape_cast %17 : vector<8x256xf32> to vector<1x8x256xf32>
    tpu.vector_store %arg5[%c0_7, %c0_8, %c0_9], %20 {strides = array<i32>} : memref<1x8x256xf32, #tpu.memory_space<vmem>>, vector<1x8x256xf32>,
    return
  }
  func.func @transform_0(%arg0: i32, %arg1: i32) -> (i32, i32, i32) {
    %c0_i32 = arith.constant 0 : i32
    %c0_i32_0 = arith.constant 0 : i32
    return %arg0, %c0_i32, %arg1 : i32, i32, i32
  }
  func.func @transform_1(%arg0: i32, %arg1: i32) -> (i32, i32) {
    %c0_i32 = arith.constant 0 : i32
    %c0_i32_0 = arith.constant 0 : i32
    %c0_i32_1 = arith.constant 0 : i32
    return %c0_i32, %c0_i32_0 : i32, i32
  }
  func.func @transform_2(%arg0: i32, %arg1: i32) -> (i32, i32) {
    %c0_i32 = arith.constant 0 : i32
    %c0_i32_0 = arith.constant 0 : i32
    %c0_i32_1 = arith.constant 0 : i32
    return %c0_i32, %c0_i32_0 : i32, i32
  }
  func.func @transform_3(%arg0: i32, %arg1: i32) -> (i32, i32, i32) {
    %c0_i32 = arith.constant 0 : i32
    %c0_i32_0 = arith.constant 0 : i32
    return %arg0, %c0_i32, %arg1 : i32, i32, i32
  }
}

</mosaic_0001>

<llo_original>
// kernel: up_forward.5
$region0: #{up_forward.5}
  #allocation0 [shape = 'u32[]', space=smem, size = 0x4, offset = 0x4, fixed_abs, tag = 'smem constant byte address 0x4 - core index']
  #allocation1 [shape = 'u32[144,128]{1,0:T(1,128)}', space=vmem, size = 0x12000, scoped, tag = 'internal scratch']
  %s0 = inlined_call_operand.vmem [shape: f32[1,4,512], index: 0, kind: input, shape index: {}]
  %s1 = inlined_call_operand.vmem [shape: f32[4,1], index: 1, kind: input, shape index: {}]
  %s2 = inlined_call_operand.vmem [shape: f32[4,1], index: 2, kind: input, shape index: {}]
  %s3 = inlined_call_operand.vmem [shape: bf16[1,4,512], index: 3, kind: output, shape index: {}]
  %s4 = sld [smem:[#allocation0]]
  $region45: #{up_forward.5} parent=0
    _
  %s6 = ssub.s32 1, %s4
  %s7 = scalar_select 0, %s6, %s4
  loop: start=0, step=1, limit=4
  $region2: #{up_forward.5} parent=0 // loop_pre_header
    _
  $region3: #{up_forward.5} parent=0 // loop_header
    %s9 = sphi 0, %s13
    %p10 = scmp.ge.s32.totalorder %s9, 4
    %s16 = sphi 0, %s28
    %s17 = sphi 0, %s24
    %s18 = sphi 0, %s16
    %s19 = sphi 0, %s17
    %s20 = sphi 0, %s18
    %s21 = sphi 0, %s19
    %s33 = sphi 0, %s35
    %s36 = sphi 0, %s33
    %s37 = sphi 0, %s36
    %s53 = sphi 0, %s37
    %s57 = sphi 0, %s57
    %s59 = sphi 0, %s57
    %s60 = sphi 0, %s59
    %s74 = sphi 0, %s60
    %s78 = sphi 0, %s78
    %s80 = sphi 0, %s78
    %s81 = sphi 0, %s80
    %s95 = sphi 0, %s81
    %s103 = sphi 0, %s105
    %s106 = sphi 0, %s103
    %s107 = sphi 0, %s106
    %s123 = sphi 0, %s107
  $region4: #{up_forward.5} parent=0 // loop_header_branch
    %12 = sbr.rel (%p10) target = $region8
  $region5: #{up_forward.5} parent=0 // loop_body
    %s14 = ssub.s32 %s9, 1
    %s15 = ssub.s32 %s9, 2
    %s22 = sadd.s32 1, %s17
    %p23 = scmp.ge.s32.totalorder %s22, 2
    %s24 = scalar_select %p23, 0, %s22
    %s25 = sadd.s32 1, %s16
    %s26 = scalar_select %p23, %s25, %s16
    %p27 = scmp.ge.s32.totalorder %s26, 1
    %s28 = scalar_select %p27, 0, %s26
    %s29 = ssub.s32 %s16, %s28
    %s30 = ssub.s32 %s17, %s24
    %s31 = sor.u32 %s29, %s30
    %p32 = scmp.eq.s32.totalorder %s31, 0
    %s34 = sadd.s32 %s33, 1
    %s35 = scalar_select %p32, %s33, %s34
    %p38 = pneg %p32
    %p39 = scmp.eq.s32.totalorder %s9, 1
    %p40 = por %p38, %p39
    %p41 = scmp.ne.s32.totalorder %s33, %s36
    %p42 = scmp.eq.s32.totalorder %s9, 0
    %p43 = por %p41, %p42
    %p44 = scmp.ne.s32.totalorder %s33, %s36
    %p45 = scmp.eq.s32.totalorder %s14, 1
    %p46 = por %p44, %p45
    %p47 = scmp.ne.s32.totalorder %s36, %s37
    %p48 = scmp.eq.s32.totalorder %s14, 0
    %p49 = por %p47, %p48
    %p50 = scmp.ne.s32.totalorder %s36, %s37
    %p51 = scmp.eq.s32.totalorder %s15, 1
    %p52 = por %p50, %p51
    %p54 = scmp.ne.s32.totalorder %s37, %s53
    %p55 = scmp.eq.s32.totalorder %s15, 0
    %p56 = por %p54, %p55
    %s58 = sadd.s32 %s57, 1
    %p61 = scmp.eq.s32.totalorder %s9, 1
    %p62 = scmp.ne.s32.totalorder %s57, %s59
    %p63 = scmp.eq.s32.totalorder %s9, 0
    %p64 = por %p62, %p63
    %p65 = scmp.ne.s32.totalorder %s57, %s59
    %p66 = scmp.eq.s32.totalorder %s14, 1
    %p67 = por %p65, %p66
    %p68 = scmp.ne.s32.totalorder %s59, %s60
    %p69 = scmp.eq.s32.totalorder %s14, 0
    %p70 = por %p68, %p69
    %p71 = scmp.ne.s32.totalorder %s59, %s60
    %p72 = scmp.eq.s32.totalorder %s15, 1
    %p73 = por %p71, %p72
    %p75 = scmp.ne.s32.totalorder %s60, %s74
    %p76 = scmp.eq.s32.totalorder %s15, 0
    %p77 = por %p75, %p76
    %s79 = sadd.s32 %s78, 1
    %p82 = scmp.eq.s32.totalorder %s9, 1
    %p83 = scmp.ne.s32.totalorder %s78, %s80
    %p84 = scmp.eq.s32.totalorder %s9, 0
    %p85 = por %p83, %p84
    %p86 = scmp.ne.s32.totalorder %s78, %s80
    %p87 = scmp.eq.s32.totalorder %s14, 1
    %p88 = por %p86, %p87
    %p89 = scmp.ne.s32.totalorder %s80, %s81
    %p90 = scmp.eq.s32.totalorder %s14, 0
    %p91 = por %p89, %p90
    %p92 = scmp.ne.s32.totalorder %s80, %s81
    %p93 = scmp.eq.s32.totalorder %s15, 1
    %p94 = por %p92, %p93
    %p96 = scmp.ne.s32.totalorder %s81, %s95
    %p97 = scmp.eq.s32.totalorder %s15, 0
    %p98 = por %p96, %p97
    %s99 = ssub.s32 %s16, %s28
    %s100 = ssub.s32 %s17, %s24
    %s101 = sor.u32 %s99, %s100
    %p102 = scmp.eq.s32.totalorder %s101, 0
    %s104 = sadd.s32 %s103, 1
    %s105 = scalar_select %p102, %s103, %s104
    %p108 = pneg %p102
    %p109 = scmp.eq.s32.totalorder %s9, 1
    %p110 = por %p108, %p109
    %p111 = scmp.ne.s32.totalorder %s103, %s106
    %p112 = scmp.eq.s32.totalorder %s9, 0
    %p113 = por %p111, %p112
    %p114 = scmp.ne.s32.totalorder %s103, %s106
    %p115 = scmp.eq.s32.totalorder %s14, 1
    %p116 = por %p114, %p115
    %p117 = scmp.ne.s32.totalorder %s106, %s107
    %p118 = scmp.eq.s32.totalorder %s14, 0
    %p119 = por %p117, %p118
    %p120 = scmp.ne.s32.totalorder %s106, %s107
    %p121 = scmp.eq.s32.totalorder %s15, 1
    %p122 = por %p120, %p121
    %p124 = scmp.ne.s32.totalorder %s107, %s123
    %p125 = scmp.eq.s32.totalorder %s15, 0
    %p126 = por %p124, %p125
    %p127 = scmp.le.s32.totalorder 1, %s9
    %p128 = scmp.lt.s32.totalorder %s9, 3
    %p129 = pnand %p127, %p128
    %p130 = pneg %p129
    // Predicated region
    $region9: #{up_forward.5} parent=5 // pred_check
      _
    $region10: #{up_forward.5} parent=5 // pred_check_branch
      %132 = sbr.rel (%p129) target = $region12
    $region11: #{up_forward.5} parent=5 // pred_region
      %s133 = ssub.s32 %s9, 1
      // Predicated region
      $region13: #{up_forward.5} parent=11 // pred_check
        %p134 = pneg %p70
      $region14: #{up_forward.5} parent=11 // pred_check_branch
        %136 = sbr.rel (%p134) target = $region16
      $region15: #{up_forward.5} parent=11 // pred_region
        _
      $region16: #{up_forward.5} parent=11 // pred_fallthru
        _
      // Predicated region
      $region17: #{up_forward.5} parent=11 // pred_check
        %p137 = pneg %p91
      $region18: #{up_forward.5} parent=11 // pred_check_branch
        %139 = sbr.rel (%p137) target = $region20
      $region19: #{up_forward.5} parent=11 // pred_region
        _
      $region20: #{up_forward.5} parent=11 // pred_fallthru
        _
    $region12: #{up_forward.5} parent=5 // pred_fallthru
      _
    %p140 = scmp.lt.s32.totalorder %s9, 2
    // Predicated region
    $region21: #{up_forward.5} parent=5 // pred_check
      %p141 = pneg %p140
    $region22: #{up_forward.5} parent=5 // pred_check_branch
      %143 = sbr.rel (%p141) target = $region24
    $region23: #{up_forward.5} parent=5 // pred_region
      // Predicated region
      $region25: #{up_forward.5} parent=23 // pred_check
        %p144 = pneg %p43
      $region26: #{up_forward.5} parent=23 // pred_check_branch
        %146 = sbr.rel (%p144) target = $region28
      $region27: #{up_forward.5} parent=23 // pred_region
        %s147 = smul.u32 2, %s17
        %p148 = scmp.lt.s32.totalorder %s16, 0
        %s149 = scalar_select %p148, %s16, 0
        %p150 = scmp.lt.s32.totalorder %s147, 3
        %s151 = scalar_select %p150, %s147, 3
        %s152 = smul.addr %s149, 4
        %s153 = sadd.s32 %s151, %s152
        %s154 = smul.addr %s153, 4
        %s155 = scalar_lea.vmem %s0, %s154
        %s156 = smul.u32 2, %s17
      $region28: #{up_forward.5} parent=23 // pred_fallthru
        _
    $region24: #{up_forward.5} parent=5 // pred_fallthru
      _
    %p157 = scmp.le.s32.totalorder 1, %s9
    %p158 = scmp.lt.s32.totalorder %s9, 3
    %p159 = pnand %p157, %p158
    %p160 = pneg %p159
    // Predicated region
    $region29: #{up_forward.5} parent=5 // pred_check
      _
    $region30: #{up_forward.5} parent=5 // pred_check_branch
      %162 = sbr.rel (%p159) target = $region32
    $region31: #{up_forward.5} parent=5 // pred_region
      %s163 = ssub.s32 %s9, 1
      %s164 = smul.u32 2, %s19
      %p165 = scmp.lt.s32.totalorder %s18, 0
      %s166 = scalar_select %p165, %s18, 0
      %p167 = scmp.lt.s32.totalorder %s164, 3
      %s168 = scalar_select %p167, %s164, 3
      %s169 = smul.addr %s166, 4
      %s170 = sadd.s32 %s168, %s169
      %s171 = smul.addr %s170, 4
      %s172 = scalar_lea.vmem %s0, %s171
      %p173 = pneg %p49
      %p174 = pneg %p46
      %p175 = pneg %p70
      %p176 = pneg %p67
      %p177 = pneg %p91
      %p178 = pneg %p88
      %p179 = pneg %p119
      %p180 = pneg %p116
      %s181 = smul.u32 2, %s19
      %p182 = scmp.lt.s32.totalorder %s18, 0
      %s183 = scalar_select %p182, %s18, 0
      %p184 = scmp.lt.s32.totalorder %s181, 3
      %s185 = scalar_select %p184, %s181, 3
      %s186 = smul.addr %s183, 4
      %s187 = sadd.s32 %s185, %s186
      %s188 = smul.addr %s187, 2
      %s189 = scalar_lea.vmem %s3, %s188
      %s190 = smul.u32 2, %s19
      %p191 = scmp.lt.s32.totalorder %s18, 0
      %s192 = scalar_select %p191, %s18, 0
      %p193 = scmp.lt.s32.totalorder %s190, 3
      %s194 = scalar_select %p193, %s190, 3
      %s195 = smul.addr %s192, 4
      %s196 = sadd.s32 %s194, %s195
      %s197 = smul.addr %s196, 4
      %s198 = scalar_lea.vmem %s0, %s197
      %s199 = smul.u32 2, %s19
      %s200 = smul.u32 2, %s19
      %p201 = scmp.lt.s32.totalorder %s18, 0
      %s202 = scalar_select %p201, %s18, 0
      %p203 = scmp.lt.s32.totalorder %s200, 3
      %s204 = scalar_select %p203, %s200, 3
      %s205 = smul.addr %s202, 4
      %s206 = sadd.s32 %s204, %s205
      %s207 = smul.addr %s206, 2
      %s208 = scalar_lea.vmem %s3, %s207
      %s209 = smul.u32 2, %s19
      %v210 = vld [vmem:[%s198] sm:$0xff]
      %v211 = vld [vmem:[%s1] sm:$0xf]
      %213 = vset.pattern.permute.xlu0 0
      %214 = vperm.xlu0 %213, %v211
      %v215 = vpop.permute.xlu0 %214
      %v217 = vunpack.c.l.s4 839922192
      %v218 = vunpack.c.0.s8 %v217
      %v219 = vlaneseq
      %v220 = vshrl.u32 %v219, 7
      %v221 = vsub.s32 %v218, %v220
      %v222 = vrot.slane %v215, %v221
      %v224 = vmul.f32 %v210, %v222
      %v225 = vld [vmem:[%s2] sm:$0xf]
      %227 = vset.pattern.permute.xlu0 0
      %228 = vperm.xlu0 %227, %v225
      %v229 = vpop.permute.xlu0 %228
      %v231 = vunpack.c.l.s4 839922192
      %v232 = vunpack.c.0.s8 %v231
      %v233 = vlaneseq
      %v234 = vshrl.u32 %v233, 7
      %v235 = vsub.s32 %v232, %v234
      %v236 = vrot.slane %v229, %v235
      %v238 = vadd.f32 %v224, %v236
      %v239 = vmax.f32 %v238, 0.0
      %v240 = vand.u32 2147483647, %v238
      %v241 = vsub.f32 0.0, %v240
      %v242 = vmul.f32 %v241, 1.442695
      %v243 = vpow.pop %v242
      %v244 = vadd.f32 %v243, 1.0
      %v245 = vlog2.pop %v244
      %v246 = vmul.f32 %v245, 0.6931472
      %v247 = vmul.f32 -0.5, %v243
      %v248 = vadd.f32 %v247, 1.0
      %v249 = vmul.f32 %v248, %v243
      %v250 = vand.u32 2147483647, %v243
      %vm251 = vcmp.lt.f32.partialorder %v250, 0.0004427343
      %v252 = vsel %vm251, %v249, %v246
      %v253 = vadd.f32 %v239, %v252
      %v254 = vtanh.pop %v253
      %v255 = vmul.f32 %v238, %v254
      %v257 = vcombine.high %v255, %v255
      %v259 = vpack.c.bf16 %v255, %v255
      %v260 = vpack.c.bf16 %v257, %v257
      %v263 = vcombine.low %v259, %v260
      %v265 = vunpack.c.l.s4 1983009808
      %v266 = vunpack.c.0.s8 %v265
      %v267 = vlaneseq
      %v268 = vshrl.u32 %v267, 7
      %v269 = vsub.s32 %v266, %v268
      %v270 = vrot.slane %v263, %v269
      %272 = vst [vmem:[%s208] sm:$0xf] %v270
      %s273 = smul.u32 2, %s19
      %p274 = scmp.lt.s32.totalorder %s18, 0
      %s275 = scalar_select %p274, %s18, 0
      %p276 = scmp.lt.s32.totalorder %s273, 3
      %s277 = scalar_select %p276, %s273, 3
      %s278 = smul.addr %s275, 4
      %s279 = sadd.s32 %s277, %s278
      %s280 = smul.addr %s279, 2
      %s281 = scalar_lea.vmem %s3, %s280
      // Predicated region
      $region33: #{up_forward.5} parent=31 // pred_check
        %p282 = pneg %p116
      $region34: #{up_forward.5} parent=31 // pred_check_branch
        %284 = sbr.rel (%p282) target = $region36
      $region35: #{up_forward.5} parent=31 // pred_region
        %s285 = smul.u32 2, %s19
      $region36: #{up_forward.5} parent=31 // pred_fallthru
        _
    $region32: #{up_forward.5} parent=5 // pred_fallthru
      _
    %p286 = scmp.le.s32.totalorder 2, %s9
    // Predicated region
    $region37: #{up_forward.5} parent=5 // pred_check
      %p287 = pneg %p286
    $region38: #{up_forward.5} parent=5 // pred_check_branch
      %289 = sbr.rel (%p287) target = $region40
    $region39: #{up_forward.5} parent=5 // pred_region
      %s290 = ssub.s32 %s9, 2
      // Predicated region
      $region41: #{up_forward.5} parent=39 // pred_check
        %p291 = pneg %p122
      $region42: #{up_forward.5} parent=39 // pred_check_branch
        %293 = sbr.rel (%p291) target = $region44
      $region43: #{up_forward.5} parent=39 // pred_region
        %s294 = smul.u32 2, %s21
        %p295 = scmp.lt.s32.totalorder %s20, 0
        %s296 = scalar_select %p295, %s20, 0
        %p297 = scmp.lt.s32.totalorder %s294, 3
        %s298 = scalar_select %p297, %s294, 3
        %s299 = smul.addr %s296, 4
        %s300 = sadd.s32 %s298, %s299
        %s301 = smul.addr %s300, 2
        %s302 = scalar_lea.vmem %s3, %s301
      $region44: #{up_forward.5} parent=39 // pred_fallthru
        _
    $region40: #{up_forward.5} parent=5 // pred_fallthru
      _
  $region6: #{up_forward.5} parent=0 // loop_footer
    %s13 = sadd.s32 1, %s9
  $region7: #{up_forward.5} parent=0 // loop_footer_branch
    %8 = sbr.rel target = $region3
  $region8: #{up_forward.5} parent=0 // loop_exit
    _

// kernel: up_forward.4
$region0: #{up_forward.4}
  #allocation0 [shape = 'u32[]', space=smem, size = 0x4, offset = 0x4, fixed_abs, tag = 'smem constant byte address 0x4 - core index']
  #allocation1 [shape = 'u32[144,128]{1,0:T(1,128)}', space=vmem, size = 0x12000, scoped, tag = 'internal scratch']
  %s0 = inlined_call_operand.vmem [shape: bf16[1,216,512], index: 0, kind: input, shape index: {}]
  %s1 = inlined_call_operand.vmem [shape: bf16[4,216], index: 1, kind: input, shape index: {}]
  %s2 = inlined_call_operand.vmem [shape: f32[1,4,512], index: 2, kind: output, shape index: {0}]
  %s3 = inlined_call_operand.vmem [shape: f32[1,2,4,1], index: 3, kind: output, shape index: {1}]
  %s4 = inlined_call_operand.vmem [shape: f32[1,2,4,1], index: 4, kind: output, shape index: {2}]
  %5 = xla_tuple %s2, %s3, %s4
  %s6 = sld [smem:[#allocation0]]
  $region95: #{up_forward.4} parent=0
    _
  %s8 = ssub.s32 1, %s6
  %s9 = scalar_select 0, %s8, %s6
  $region1: #{up_forward.4} parent=0
    #allocation2 [shape = 'u8[221184]{0}', space=vmem, size = 0x36000, scoped, tag = 'input window, operand 0']
    loop: start=0, step=1, limit=4
    $region2: #{up_forward.4} parent=1 // loop_pre_header
      _
    $region3: #{up_forward.4} parent=1 // loop_header
      %s11 = sphi 0, %s15
      %p12 = scmp.ge.s32.totalorder %s11, 4
      %s18 = sphi 0, %s30
      %s19 = sphi 0, %s26
      %s20 = sphi 0, %s18
      %s21 = sphi 0, %s19
      %s22 = sphi 0, %s20
      %s23 = sphi 0, %s21
      %s35 = sphi 0, %s37
      %s38 = sphi 0, %s35
      %s39 = sphi 0, %s38
      %s55 = sphi 0, %s39
      %s59 = sphi 0, %s59
      %s61 = sphi 0, %s59
      %s62 = sphi 0, %s61
      %s76 = sphi 0, %s62
      %s84 = sphi 0, %s86
      %s87 = sphi 0, %s84
      %s88 = sphi 0, %s87
      %s104 = sphi 0, %s88
      %s112 = sphi 0, %s114
      %s115 = sphi 0, %s112
      %s116 = sphi 0, %s115
      %s132 = sphi 0, %s116
      %s140 = sphi 0, %s142
      %s143 = sphi 0, %s140
      %s144 = sphi 0, %s143
      %s160 = sphi 0, %s144
    $region4: #{up_forward.4} parent=1 // loop_header_branch
      %14 = sbr.rel (%p12) target = $region8
    $region5: #{up_forward.4} parent=1 // loop_body
      %s16 = ssub.s32 %s11, 1
      %s17 = ssub.s32 %s11, 2
      %s24 = sadd.s32 1, %s19
      %p25 = scmp.ge.s32.totalorder %s24, 2
      %s26 = scalar_select %p25, 0, %s24
      %s27 = sadd.s32 1, %s18
      %s28 = scalar_select %p25, %s27, %s18
      %p29 = scmp.ge.s32.totalorder %s28, 1
      %s30 = scalar_select %p29, 0, %s28
      %s31 = ssub.s32 %s18, %s30
      %s32 = ssub.s32 %s19, %s26
      %s33 = sor.u32 %s31, %s32
      %p34 = scmp.eq.s32.totalorder %s33, 0
      %s36 = sadd.s32 %s35, 1
      %s37 = scalar_select %p34, %s35, %s36
      %p40 = pneg %p34
      %p41 = scmp.eq.s32.totalorder %s11, 1
      %p42 = por %p40, %p41
      %p43 = scmp.ne.s32.totalorder %s35, %s38
      %p44 = scmp.eq.s32.totalorder %s11, 0
      %p45 = por %p43, %p44
      %p46 = scmp.ne.s32.totalorder %s35, %s38
      %p47 = scmp.eq.s32.totalorder %s16, 1
      %p48 = por %p46, %p47
      %p49 = scmp.ne.s32.totalorder %s38, %s39
      %p50 = scmp.eq.s32.totalorder %s16, 0
      %p51 = por %p49, %p50
      %p52 = scmp.ne.s32.totalorder %s38, %s39
      %p53 = scmp.eq.s32.totalorder %s17, 1
      %p54 = por %p52, %p53
      %p56 = scmp.ne.s32.totalorder %s39, %s55
      %p57 = scmp.eq.s32.totalorder %s17, 0
      %p58 = por %p56, %p57
      %s60 = sadd.s32 %s59, 1
      %p63 = scmp.eq.s32.totalorder %s11, 1
      %p64 = scmp.ne.s32.totalorder %s59, %s61
      %p65 = scmp.eq.s32.totalorder %s11, 0
      %p66 = por %p64, %p65
      %p67 = scmp.ne.s32.totalorder %s59, %s61
      %p68 = scmp.eq.s32.totalorder %s16, 1
      %p69 = por %p67, %p68
      %p70 = scmp.ne.s32.totalorder %s61, %s62
      %p71 = scmp.eq.s32.totalorder %s16, 0
      %p72 = por %p70, %p71
      %p73 = scmp.ne.s32.totalorder %s61, %s62
      %p74 = scmp.eq.s32.totalorder %s17, 1
      %p75 = por %p73, %p74
      %p77 = scmp.ne.s32.totalorder %s62, %s76
      %p78 = scmp.eq.s32.totalorder %s17, 0
      %p79 = por %p77, %p78
      %s80 = ssub.s32 %s18, %s30
      %s81 = ssub.s32 %s19, %s26
      %s82 = sor.u32 %s80, %s81
      %p83 = scmp.eq.s32.totalorder %s82, 0
      %s85 = sadd.s32 %s84, 1
      %s86 = scalar_select %p83, %s84, %s85
      %p89 = pneg %p83
      %p90 = scmp.eq.s32.totalorder %s11, 1
      %p91 = por %p89, %p90
      %p92 = scmp.ne.s32.totalorder %s84, %s87
      %p93 = scmp.eq.s32.totalorder %s11, 0
      %p94 = por %p92, %p93
      %p95 = scmp.ne.s32.totalorder %s84, %s87
      %p96 = scmp.eq.s32.totalorder %s16, 1
      %p97 = por %p95, %p96
      %p98 = scmp.ne.s32.totalorder %s87, %s88
      %p99 = scmp.eq.s32.totalorder %s16, 0
      %p100 = por %p98, %p99
      %p101 = scmp.ne.s32.totalorder %s87, %s88
      %p102 = scmp.eq.s32.totalorder %s17, 1
      %p103 = por %p101, %p102
      %p105 = scmp.ne.s32.totalorder %s88, %s104
      %p106 = scmp.eq.s32.totalorder %s17, 0
      %p107 = por %p105, %p106
      %s108 = ssub.s32 %s18, %s30
      %s109 = ssub.s32 %s19, %s26
      %s110 = sor.u32 %s108, %s109
      %p111 = scmp.eq.s32.totalorder %s110, 0
      %s113 = sadd.s32 %s112, 1
      %s114 = scalar_select %p111, %s112, %s113
      %p117 = pneg %p111
      %p118 = scmp.eq.s32.totalorder %s11, 1
      %p119 = por %p117, %p118
      %p120 = scmp.ne.s32.totalorder %s112, %s115
      %p121 = scmp.eq.s32.totalorder %s11, 0
      %p122 = por %p120, %p121
      %p123 = scmp.ne.s32.totalorder %s112, %s115
      %p124 = scmp.eq.s32.totalorder %s16, 1
      %p125 = por %p123, %p124
      %p126 = scmp.ne.s32.totalorder %s115, %s116
      %p127 = scmp.eq.s32.totalorder %s16, 0
      %p128 = por %p126, %p127
      %p129 = scmp.ne.s32.totalorder %s115, %s116
      %p130 = scmp.eq.s32.totalorder %s17, 1
      %p131 = por %p129, %p130
      %p133 = scmp.ne.s32.totalorder %s116, %s132
      %p134 = scmp.eq.s32.totalorder %s17, 0
      %p135 = por %p133, %p134
      %s136 = ssub.s32 %s18, %s30
      %s137 = ssub.s32 %s19, %s26
      %s138 = sor.u32 %s136, %s137
      %p139 = scmp.eq.s32.totalorder %s138, 0
      %s141 = sadd.s32 %s140, 1
      %s142 = scalar_select %p139, %s140, %s141
      %p145 = pneg %p139
      %p146 = scmp.eq.s32.totalorder %s11, 1
      %p147 = por %p145, %p146
      %p148 = scmp.ne.s32.totalorder %s140, %s143
      %p149 = scmp.eq.s32.totalorder %s11, 0
      %p150 = por %p148, %p149
      %p151 = scmp.ne.s32.totalorder %s140, %s143
      %p152 = scmp.eq.s32.totalorder %s16, 1
      %p153 = por %p151, %p152
      %p154 = scmp.ne.s32.totalorder %s143, %s144
      %p155 = scmp.eq.s32.totalorder %s16, 0
      %p156 = por %p154, %p155
      %p157 = scmp.ne.s32.totalorder %s143, %s144
      %p158 = scmp.eq.s32.totalorder %s17, 1
      %p159 = por %p157, %p158
      %p161 = scmp.ne.s32.totalorder %s144, %s160
      %p162 = scmp.eq.s32.totalorder %s17, 0
      %p163 = por %p161, %p162
      %p164 = scmp.le.s32.totalorder 1, %s11
      %p165 = scmp.lt.s32.totalorder %s11, 3
      %p166 = pnand %p164, %p165
      %p167 = pneg %p166
      // Predicated region
      $region9: #{up_forward.4} parent=5 // pred_check
        _
      $region10: #{up_forward.4} parent=5 // pred_check_branch
        %169 = sbr.rel (%p166) target = $region12
      $region11: #{up_forward.4} parent=5 // pred_region
        %s170 = ssub.s32 %s11, 1
        // Predicated region
        $region13: #{up_forward.4} parent=11 // pred_check
          %p171 = pneg %p72
        $region14: #{up_forward.4} parent=11 // pred_check_branch
          %173 = sbr.rel (%p171) target = $region16
        $region15: #{up_forward.4} parent=11 // pred_region
          _
        $region16: #{up_forward.4} parent=11 // pred_fallthru
          _
      $region12: #{up_forward.4} parent=5 // pred_fallthru
        _
      %p174 = scmp.lt.s32.totalorder %s11, 2
      // Predicated region
      $region17: #{up_forward.4} parent=5 // pred_check
        %p175 = pneg %p174
      $region18: #{up_forward.4} parent=5 // pred_check_branch
        %177 = sbr.rel (%p175) target = $region20
      $region19: #{up_forward.4} parent=5 // pred_region
        // Predicated region
        $region21: #{up_forward.4} parent=19 // pred_check
          %p178 = pneg %p45
        $region22: #{up_forward.4} parent=19 // pred_check_branch
          %180 = sbr.rel (%p178) target = $region24
        $region23: #{up_forward.4} parent=19 // pred_region
          %s181 = sand.u32 %s35, 1
          %s182 = sand.u32 %s35, 1
          %s183 = smul.addr %s182, 216
          %s184 = scalar_lea.vmem [#allocation2], %s183
          %s185 = smul.u32 2, %s19
          %s186 = smul.addr %s18, 108
          %s187 = sadd.s32 %s185, %s186
          %s188 = smul.addr %s187, 4
          %s189 = scalar_lea.vmem %s0, %s188
          // Predicated region
          $region25: #{up_forward.4} parent=23 // pred_check
            _
          $region26: #{up_forward.4} parent=23 // pred_check_branch
            %191 = sbr.rel (0) target = $region28
          $region27: #{up_forward.4} parent=23 // pred_region
            // Predicated region
            $region29: #{up_forward.4} parent=27 // pred_check
              _
            $region30: #{up_forward.4} parent=27 // pred_check_branch
              %193 = sbr.rel (0) target = $region32
            $region31: #{up_forward.4} parent=27 // pred_region
              // Predicated region
              $region44: #{up_forward.4} parent=31 // pred_check
                _
              $region45: #{up_forward.4} parent=31 // pred_check_branch
                %261 = sbr.rel (0) target = $region47
              $region46: #{up_forward.4} parent=31 // pred_region
                loop: start=0, step=1, limit=1
                $region48: #{up_forward.4} parent=46 // loop_pre_header
                  _
                $region49: #{up_forward.4} parent=46 // loop_header
                  %s263 = sphi 0, %s267
                  %p264 = scmp.ge.s32.totalorder %s263, 1
                  %s268 = sphi %s189, %s189
                  %s269 = sphi %s184, %s184
                $region50: #{up_forward.4} parent=46 // loop_header_branch
                  %266 = sbr.rel (%p264) target = $region54
                $region51: #{up_forward.4} parent=46 // loop_body
                  %v270 = vld [vmem:[%s268] sm:$0xff]
                  %271 = vst [vmem:[%s269] sm:$0xff] %v270
                  %v272 = vld [vmem:[%s268 + $0x10] sm:$0xff]
                  %273 = vst [vmem:[%s269 + $0x8] sm:$0xff] %v272
                  %v274 = vld [vmem:[%s268 + $0x20] sm:$0xff]
                  %275 = vst [vmem:[%s269 + $0x10] sm:$0xff] %v274
                  %v276 = vld [vmem:[%s268 + $0x30] sm:$0xff]
                  %277 = vst [vmem:[%s269 + $0x18] sm:$0xff] %v276
                  %v278 = vld [vmem:[%s268 + $0x40] sm:$0xff]
                  %279 = vst [vmem:[%s269 + $0x20] sm:$0xff] %v278
                  %v280 = vld [vmem:[%s268 + $0x50] sm:$0xff]
                  %281 = vst [vmem:[%s269 + $0x28] sm:$0xff] %v280
                  %v282 = vld [vmem:[%s268 + $0x60] sm:$0xff]
                  %283 = vst [vmem:[%s269 + $0x30] sm:$0xff] %v282
                  %v284 = vld [vmem:[%s268 + $0x70] sm:$0xff]
                  %285 = vst [vmem:[%s269 + $0x38] sm:$0xff] %v284
                  %v286 = vld [vmem:[%s268 + $0x80] sm:$0xff]
                  %287 = vst [vmem:[%s269 + $0x40] sm:$0xff] %v286
                  %v288 = vld [vmem:[%s268 + $0x90] sm:$0xff]
                  %289 = vst [vmem:[%s269 + $0x48] sm:$0xff] %v288
                  %v290 = vld [vmem:[%s268 + $0xa0] sm:$0xff]
                  %291 = vst [vmem:[%s269 + $0x50] sm:$0xff] %v290
                  %v292 = vld [vmem:[%s268 + $0xb0] sm:$0xff]
                  %293 = vst [vmem:[%s269 + $0x58] sm:$0xff] %v292
                  %v294 = vld [vmem:[%s268 + $0xc0] sm:$0xff]
                  %295 = vst [vmem:[%s269 + $0x60] sm:$0xff] %v294
                  %v296 = vld [vmem:[%s268 + $0xd0] sm:$0xff]
                  %297 = vst [vmem:[%s269 + $0x68] sm:$0xff] %v296
                  %v298 = vld [vmem:[%s268 + $0xe0] sm:$0xff]
                  %299 = vst [vmem:[%s269 + $0x70] sm:$0xff] %v298
                  %v300 = vld [vmem:[%s268 + $0xf0] sm:$0xff]
                  %301 = vst [vmem:[%s269 + $0x78] sm:$0xff] %v300
                  %v302 = vld [vmem:[%s268 + $0x100] sm:$0xff]
                  %303 = vst [vmem:[%s269 + $0x80] sm:$0xff] %v302
                  %v304 = vld [vmem:[%s268 + $0x110] sm:$0xff]
                  %305 = vst [vmem:[%s269 + $0x88] sm:$0xff] %v304
                  %v306 = vld [vmem:[%s268 + $0x120] sm:$0xff]
                  %307 = vst [vmem:[%s269 + $0x90] sm:$0xff] %v306
                  %v308 = vld [vmem:[%s268 + $0x130] sm:$0xff]
                  %309 = vst [vmem:[%s269 + $0x98] sm:$0xff] %v308
                  %v310 = vld [vmem:[%s268 + $0x140] sm:$0xff]
                  %311 = vst [vmem:[%s269 + $0xa0] sm:$0xff] %v310
                  %v312 = vld [vmem:[%s268 + $0x150] sm:$0xff]
                  %313 = vst [vmem:[%s269 + $0xa8] sm:$0xff] %v312
                  %v314 = vld [vmem:[%s268 + $0x160] sm:$0xff]
                  %315 = vst [vmem:[%s269 + $0xb0] sm:$0xff] %v314
                  %v316 = vld [vmem:[%s268 + $0x170] sm:$0xff]
                  %317 = vst [vmem:[%s269 + $0xb8] sm:$0xff] %v316
                  %v318 = vld [vmem:[%s268 + $0x180] sm:$0xff]
                  %319 = vst [vmem:[%s269 + $0xc0] sm:$0xff] %v318
                  %v320 = vld [vmem:[%s268 + $0x190] sm:$0xff]
                  %321 = vst [vmem:[%s269 + $0xc8] sm:$0xff] %v320
                  %v322 = vld [vmem:[%s268 + $0x1a0] sm:$0xff]
                  %323 = vst [vmem:[%s269 + $0xd0] sm:$0xff] %v322
                $region52: #{up_forward.4} parent=46 // loop_footer
                  %s267 = sadd.s32 1, %s263
                $region53: #{up_forward.4} parent=46 // loop_footer_branch
                  %262 = sbr.rel target = $region49
                $region54: #{up_forward.4} parent=46 // loop_exit
                  _
              $region47: #{up_forward.4} parent=31 // pred_fallthru
                _
              // Predicated region
              $region55: #{up_forward.4} parent=31 // pred_check
                _
              $region56: #{up_forward.4} parent=31 // pred_check_branch
                %325 = sbr.rel target = $region58
              $region57: #{up_forward.4} parent=31 // pred_region
                _
              $region58: #{up_forward.4} parent=31 // pred_fallthru
                _
            $region32: #{up_forward.4} parent=27 // pred_fallthru
              _
            // Predicated region
            $region33: #{up_forward.4} parent=27 // pred_check
              _
            $region34: #{up_forward.4} parent=27 // pred_check_branch
              %195 = sbr.rel target = $region36
            $region35: #{up_forward.4} parent=27 // pred_region
              %s197 = ssub.s32 256, 1
              loop: start=0, step=1, limit=1
              $region37: #{up_forward.4} parent=35 // loop_pre_header
                _
              $region38: #{up_forward.4} parent=35 // loop_header
                %s199 = sphi 0, %s203
                %p200 = scmp.ge.s32.totalorder %s199, 1
                %s204 = sphi %s189, %s189
                %s205 = sphi %s184, %s184
              $region39: #{up_forward.4} parent=35 // loop_header_branch
                %202 = sbr.rel (%p200) target = $region43
              $region40: #{up_forward.4} parent=35 // loop_body
                %v206 = vld [vmem:[%s204] sm:%s197]
                %207 = vst [vmem:[%s205] sm:%s197] %v206
                %v208 = vld [vmem:[%s204 + $0x10] sm:%s197]
                %209 = vst [vmem:[%s205 + $0x8] sm:%s197] %v208
                %v210 = vld [vmem:[%s204 + $0x20] sm:%s197]
                %211 = vst [vmem:[%s205 + $0x10] sm:%s197] %v210
                %v212 = vld [vmem:[%s204 + $0x30] sm:%s197]
                %213 = vst [vmem:[%s205 + $0x18] sm:%s197] %v212
                %v214 = vld [vmem:[%s204 + $0x40] sm:%s197]
                %215 = vst [vmem:[%s205 + $0x20] sm:%s197] %v214
                %v216 = vld [vmem:[%s204 + $0x50] sm:%s197]
                %217 = vst [vmem:[%s205 + $0x28] sm:%s197] %v216
                %v218 = vld [vmem:[%s204 + $0x60] sm:%s197]
                %219 = vst [vmem:[%s205 + $0x30] sm:%s197] %v218
                %v220 = vld [vmem:[%s204 + $0x70] sm:%s197]
                %221 = vst [vmem:[%s205 + $0x38] sm:%s197] %v220
                %v222 = vld [vmem:[%s204 + $0x80] sm:%s197]
                %223 = vst [vmem:[%s205 + $0x40] sm:%s197] %v222
                %v224 = vld [vmem:[%s204 + $0x90] sm:%s197]
                %225 = vst [vmem:[%s205 + $0x48] sm:%s197] %v224
                %v226 = vld [vmem:[%s204 + $0xa0] sm:%s197]
                %227 = vst [vmem:[%s205 + $0x50] sm:%s197] %v226
                %v228 = vld [vmem:[%s204 + $0xb0] sm:%s197]
                %229 = vst [vmem:[%s205 + $0x58] sm:%s197] %v228
                %v230 = vld [vmem:[%s204 + $0xc0] sm:%s197]
                %231 = vst [vmem:[%s205 + $0x60] sm:%s197] %v230
                %v232 = vld [vmem:[%s204 + $0xd0] sm:%s197]
                %233 = vst [vmem:[%s205 + $0x68] sm:%s197] %v232
                %v234 = vld [vmem:[%s204 + $0xe0] sm:%s197]
                %235 = vst [vmem:[%s205 + $0x70] sm:%s197] %v234
                %v236 = vld [vmem:[%s204 + $0xf0] sm:%s197]
                %237 = vst [vmem:[%s205 + $0x78] sm:%s197] %v236
                %v238 = vld [vmem:[%s204 + $0x100] sm:%s197]
                %239 = vst [vmem:[%s205 + $0x80] sm:%s197] %v238
                %v240 = vld [vmem:[%s204 + $0x110] sm:%s197]
                %241 = vst [vmem:[%s205 + $0x88] sm:%s197] %v240
                %v242 = vld [vmem:[%s204 + $0x120] sm:%s197]
                %243 = vst [vmem:[%s205 + $0x90] sm:%s197] %v242
                %v244 = vld [vmem:[%s204 + $0x130] sm:%s197]
                %245 = vst [vmem:[%s205 + $0x98] sm:%s197] %v244
                %v246 = vld [vmem:[%s204 + $0x140] sm:%s197]
                %247 = vst [vmem:[%s205 + $0xa0] sm:%s197] %v246
                %v248 = vld [vmem:[%s204 + $0x150] sm:%s197]
                %249 = vst [vmem:[%s205 + $0xa8] sm:%s197] %v248
                %v250 = vld [vmem:[%s204 + $0x160] sm:%s197]
                %251 = vst [vmem:[%s205 + $0xb0] sm:%s197] %v250
                %v252 = vld [vmem:[%s204 + $0x170] sm:%s197]
                %253 = vst [vmem:[%s205 + $0xb8] sm:%s197] %v252
                %v254 = vld [vmem:[%s204 + $0x180] sm:%s197]
                %255 = vst [vmem:[%s205 + $0xc0] sm:%s197] %v254
                %v256 = vld [vmem:[%s204 + $0x190] sm:%s197]
                %257 = vst [vmem:[%s205 + $0xc8] sm:%s197] %v256
                %v258 = vld [vmem:[%s204 + $0x1a0] sm:%s197]
                %259 = vst [vmem:[%s205 + $0xd0] sm:%s197] %v258
              $region41: #{up_forward.4} parent=35 // loop_footer
                %s203 = sadd.s32 1, %s199
              $region42: #{up_forward.4} parent=35 // loop_footer_branch
                %198 = sbr.rel target = $region38
              $region43: #{up_forward.4} parent=35 // loop_exit
                _
            $region36: #{up_forward.4} parent=27 // pred_fallthru
              _
          $region28: #{up_forward.4} parent=23 // pred_fallthru
            _
          %326 = vnop
        $region24: #{up_forward.4} parent=19 // pred_fallthru
          _
      $region20: #{up_forward.4} parent=5 // pred_fallthru
        _
      %p327 = scmp.le.s32.totalorder 1, %s11
      %p328 = scmp.lt.s32.totalorder %s11, 3
      %p329 = pnand %p327, %p328
      %p330 = pneg %p329
      // Predicated region
      $region59: #{up_forward.4} parent=5 // pred_check
        _
      $region60: #{up_forward.4} parent=5 // pred_check_branch
        %332 = sbr.rel (%p329) target = $region62
      $region61: #{up_forward.4} parent=5 // pred_region
        %s333 = ssub.s32 %s11, 1
        %s334 = sand.u32 %s38, 1
        %s335 = sand.u32 %s38, 1
        %s336 = smul.addr %s335, 216
        %s337 = scalar_lea.vmem [#allocation2], %s336
        // Predicated region
        $region63: #{up_forward.4} parent=61 // pred_check
          %p338 = pneg %p51
        $region64: #{up_forward.4} parent=61 // pred_check_branch
          %340 = sbr.rel (%p338) target = $region66
        $region65: #{up_forward.4} parent=61 // pred_region
          _
        $region66: #{up_forward.4} parent=61 // pred_fallthru
          _
        %s341 = sand.u32 %s38, 1
        %s342 = sand.u32 %s38, 1
        %s343 = smul.addr %s342, 216
        %s344 = scalar_lea.vmem [#allocation2], %s343
        %p345 = pneg %p51
        %p346 = pneg %p48
        %p347 = pneg %p72
        %p348 = pneg %p69
        %p349 = pneg %p100
        %p350 = pneg %p97
        %s351 = smul.u32 2, %s21
        %p352 = scmp.lt.s32.totalorder %s20, 0
        %s353 = scalar_select %p352, %s20, 0
        %p354 = scmp.lt.s32.totalorder %s351, 3
        %s355 = scalar_select %p354, %s351, 3
        %s356 = smul.addr %s353, 4
        %s357 = sadd.s32 %s355, %s356
        %s358 = smul.addr %s357, 4
        %s359 = scalar_lea.vmem %s2, %s358
        %p360 = pneg %p128
        %p361 = pneg %p125
        %p362 = scmp.lt.s32.totalorder %s20, 0
        %s363 = scalar_select %p362, %s20, 0
        %p364 = scmp.lt.s32.totalorder %s21, 1
        %s365 = scalar_select %p364, %s21, 1
        %s366 = smul.addr %s363, 2
        %s367 = sadd.s32 %s365, %s366
        %s368 = smul.addr %s367, 4
        %s369 = scalar_lea.vmem %s3, %s368
        %p370 = pneg %p156
        %p371 = pneg %p153
        %p372 = scmp.lt.s32.totalorder %s20, 0
        %s373 = scalar_select %p372, %s20, 0
        %p374 = scmp.lt.s32.totalorder %s21, 1
        %s375 = scalar_select %p374, %s21, 1
        %s376 = smul.addr %s373, 2
        %s377 = sadd.s32 %s375, %s376
        %s378 = smul.addr %s377, 4
        %s379 = scalar_lea.vmem %s4, %s378
        %s380 = smul.u32 2, %s21
        %s381 = smul.u32 2, %s21
        %p382 = scmp.lt.s32.totalorder %s20, 0
        %s383 = scalar_select %p382, %s20, 0
        %p384 = scmp.lt.s32.totalorder %s381, 3
        %s385 = scalar_select %p384, %s381, 3
        %s386 = smul.addr %s383, 4
        %s387 = sadd.s32 %s385, %s386
        %s388 = smul.addr %s387, 4
        %s389 = scalar_lea.vmem %s2, %s388
        %s390 = smul.u32 2, %s21
        %p391 = scmp.lt.s32.totalorder %s20, 0
        %s392 = scalar_select %p391, %s20, 0
        %p393 = scmp.lt.s32.totalorder %s21, 1
        %s394 = scalar_select %p393, %s21, 1
        %s395 = smul.addr %s392, 2
        %s396 = sadd.s32 %s394, %s395
        %s397 = smul.addr %s396, 4
        %s398 = scalar_lea.vmem %s3, %s397
        %p399 = scmp.lt.s32.totalorder %s20, 0
        %s400 = scalar_select %p399, %s20, 0
        %p401 = scmp.lt.s32.totalorder %s21, 1
        %s402 = scalar_select %p401, %s21, 1
        %s403 = smul.addr %s400, 2
        %s404 = sadd.s32 %s402, %s403
        %s405 = smul.addr %s404, 4
        %s406 = scalar_lea.vmem %s4, %s405
        %v408 = vld [vmem:[%s1] sm:$0xf]
        %v409 = vld [vmem:[%s337] sm:$0xff]
        %v410 = vld [vmem:[%s337 + $0x8] sm:$0xff]
        %v411 = vld [vmem:[%s337 + $0x10] sm:$0xff]
        %v412 = vld [vmem:[%s337 + $0x18] sm:$0xff]
        %v413 = vld [vmem:[%s337 + $0x20] sm:$0xff]
        %v414 = vld [vmem:[%s337 + $0x28] sm:$0xff]
        %v415 = vld [vmem:[%s337 + $0x30] sm:$0xff]
        %v416 = vld [vmem:[%s337 + $0x38] sm:$0xff]
        %v417 = vld [vmem:[%s337 + $0x40] sm:$0xff]
        %v418 = vld [vmem:[%s337 + $0x48] sm:$0xff]
        %v419 = vld [vmem:[%s337 + $0x50] sm:$0xff]
        %v420 = vld [vmem:[%s337 + $0x58] sm:$0xff]
        %v421 = vld [vmem:[%s337 + $0x60] sm:$0xff]
        %v422 = vld [vmem:[%s337 + $0x68] sm:$0xff]
        %v423 = vld [vmem:[%s337 + $0x70] sm:$0xff]
        %v424 = vld [vmem:[%s337 + $0x78] sm:$0xff]
        %v425 = vld [vmem:[%s337 + $0x80] sm:$0xff]
        %v426 = vld [vmem:[%s337 + $0x88] sm:$0xff]
        %v427 = vld [vmem:[%s337 + $0x90] sm:$0xff]
        %v428 = vld [vmem:[%s337 + $0x98] sm:$0xff]
        %v429 = vld [vmem:[%s337 + $0xa0] sm:$0xff]
        %v430 = vld [vmem:[%s337 + $0xa8] sm:$0xff]
        %v431 = vld [vmem:[%s337 + $0xb0] sm:$0xff]
        %v432 = vld [vmem:[%s337 + $0xb8] sm:$0xff]
        %v433 = vld [vmem:[%s337 + $0xc0] sm:$0xff]
        %v434 = vld [vmem:[%s337 + $0xc8] sm:$0xff]
        %v435 = vld [vmem:[%s337 + $0xd0] sm:$0xff]
        %v438 = vunpack.c.l.s4 1983009808
        %v439 = vunpack.c.0.s8 %v438
        %v440 = vlaneseq
        %v441 = vshrl.u32 %v440, 7
        %v442 = vsub.s32 %v439, %v441
        %v443 = vrot.slane %v408, %v442
        %v444 = vcombine.high %v443, %v443
        %v473 = vunpack.c.l.b16 %v409
        %v474 = vunpack.c.h.b16 %v409
        %v475 = vunpack.c.l.b16 %v410
        %v476 = vunpack.c.h.b16 %v410
        %v477 = vunpack.c.l.b16 %v411
        %v478 = vunpack.c.h.b16 %v411
        %v479 = vunpack.c.l.b16 %v412
        %v480 = vunpack.c.h.b16 %v412
        %v481 = vunpack.c.l.b16 %v413
        %v482 = vunpack.c.h.b16 %v413
        %v483 = vunpack.c.l.b16 %v414
        %v484 = vunpack.c.h.b16 %v414
        %v485 = vunpack.c.l.b16 %v415
        %v486 = vunpack.c.h.b16 %v415
        %v487 = vunpack.c.l.b16 %v416
        %v488 = vunpack.c.h.b16 %v416
        %v489 = vunpack.c.l.b16 %v417
        %v490 = vunpack.c.h.b16 %v417
        %v491 = vunpack.c.l.b16 %v418
        %v492 = vunpack.c.h.b16 %v418
        %v493 = vunpack.c.l.b16 %v419
        %v494 = vunpack.c.h.b16 %v419
        %v495 = vunpack.c.l.b16 %v420
        %v496 = vunpack.c.h.b16 %v420
        %v497 = vunpack.c.l.b16 %v421
        %v498 = vunpack.c.h.b16 %v421
        %v499 = vunpack.c.l.b16 %v422
        %v500 = vunpack.c.h.b16 %v422
        %v501 = vunpack.c.l.b16 %v423
        %v502 = vunpack.c.h.b16 %v423
        %v503 = vunpack.c.l.b16 %v424
        %v504 = vunpack.c.h.b16 %v424
        %v505 = vunpack.c.l.b16 %v425
        %v506 = vunpack.c.h.b16 %v425
        %v507 = vunpack.c.l.b16 %v426
        %v508 = vunpack.c.h.b16 %v426
        %v509 = vunpack.c.l.b16 %v427
        %v510 = vunpack.c.h.b16 %v427
        %v511 = vunpack.c.l.b16 %v428
        %v512 = vunpack.c.h.b16 %v428
        %v513 = vunpack.c.l.b16 %v429
        %v514 = vunpack.c.h.b16 %v429
        %v515 = vunpack.c.l.b16 %v430
        %v516 = vunpack.c.h.b16 %v430
        %v517 = vunpack.c.l.b16 %v431
        %v518 = vunpack.c.h.b16 %v431
        %v519 = vunpack.c.l.b16 %v432
        %v520 = vunpack.c.h.b16 %v432
        %v521 = vunpack.c.l.b16 %v433
        %v522 = vunpack.c.h.b16 %v433
        %v523 = vunpack.c.l.b16 %v434
        %v524 = vunpack.c.h.b16 %v434
        %v525 = vunpack.c.l.b16 %v435
        %v526 = vunpack.c.h.b16 %v435
        %v527 = vpack.c.b16 %v475, %v473
        %v528 = vpack.c.b16 %v476, %v474
        %v529 = vpack.c.b16 %v479, %v477
        %v530 = vpack.c.b16 %v480, %v478
        %v531 = vpack.c.b16 %v483, %v481
        %v532 = vpack.c.b16 %v484, %v482
        %v533 = vpack.c.b16 %v487, %v485
        %v534 = vpack.c.b16 %v488, %v486
        %v535 = vpack.c.b16 %v491, %v489
        %v536 = vpack.c.b16 %v492, %v490
        %v537 = vpack.c.b16 %v495, %v493
        %v538 = vpack.c.b16 %v496, %v494
        %v539 = vpack.c.b16 %v499, %v497
        %v540 = vpack.c.b16 %v500, %v498
        %v541 = vpack.c.b16 %v503, %v501
        %v542 = vpack.c.b16 %v504, %v502
        %v543 = vpack.c.b16 %v507, %v505
        %v544 = vpack.c.b16 %v508, %v506
        %v545 = vpack.c.b16 %v511, %v509
        %v546 = vpack.c.b16 %v512, %v510
        %v547 = vpack.c.b16 %v515, %v513
        %v548 = vpack.c.b16 %v516, %v514
        %v549 = vpack.c.b16 %v519, %v517
        %v550 = vpack.c.b16 %v520, %v518
        %v551 = vpack.c.b16 %v523, %v521
        %v552 = vpack.c.b16 %v524, %v522
        %v553 = vpack.c.b16 %v525, %v525
        %v554 = vpack.c.b16 %v526, %v526
        %vm581 = vcmask 719872
        %v583 = vsel %vm581, %v444, 0
        %vm585 = vcmask 1043456
        %v587 = vsel %vm585, %v553, 0
        %v590 = vsel %vm585, %v554, 0
        %592 = vmatprep.subr.bf16.mxu0 %v542
        %593 = vmatpush1.bf16.msra.mxu0 %v541
        %594 = vmatprep.subr.bf16.mxu0 %v540
        %595 = vmatpush1.bf16.msra.mxu0 %v539
        %596 = vmatprep.subr.bf16.mxu0 %v538
        %597 = vmatpush1.bf16.msra.mxu0 %v537
        %598 = vmatprep.subr.bf16.mxu0 %v536
        %599 = vmatpush1.bf16.msra.mxu0 %v535
        %600 = vmatprep.subr.bf16.mxu0 %v534
        %601 = vmatpush1.bf16.msra.mxu0 %v533
        %602 = vmatprep.subr.bf16.mxu0 %v532
        %603 = vmatpush1.bf16.msra.mxu0 %v531
        %604 = vmatprep.subr.bf16.mxu0 %v530
        %605 = vmatpush1.bf16.msra.mxu0 %v529
        %606 = vmatprep.subr.bf16.mxu0 %v528
        %607 = vmatpush1.bf16.msra.mxu0 %v527
        %608 = vmatprep.subr.bf16.mxu0 0
        %609 = vmatpush2.bf16.msra.mxu0 0
        %610 = vmatprep.subr.bf16.mxu0 0
        %611 = vmatpush2.bf16.msra.mxu0 0
        %612 = vmatprep.subr.bf16.mxu0 %v590
        %613 = vmatpush2.bf16.msra.mxu0 %v587
        %614 = vmatprep.subr.bf16.mxu0 %v552
        %615 = vmatpush2.bf16.msra.mxu0 %v551
        %616 = vmatprep.subr.bf16.mxu0 %v550
        %617 = vmatpush2.bf16.msra.mxu0 %v549
        %618 = vmatprep.subr.bf16.mxu0 %v548
        %619 = vmatpush2.bf16.msra.mxu0 %v547
        %620 = vmatprep.subr.bf16.mxu0 %v546
        %621 = vmatpush2.bf16.msra.mxu0 %v545
        %622 = vmatprep.subr.bf16.mxu0 %v544
        %623 = vmatpush2.bf16.msra.mxu0 %v543
        %624 = vmatprep.mubr.bf16.mxu0 %v583
        %625 = vmatmul.mubr.bf16.gmra.mxu0 %v443
        %v626 = vpop.f32.mrf.mxu0
        %v627 = vadd.f32 0.0, %v626
        %v628 = vpop.f32.mrf.mxu0
        %v629 = vadd.f32 0.0, %v628
        %v630 = vpop.f32.mrf.mxu0
        %v631 = vpop.f32.mrf.mxu0
        %632 = vdwg.mxu0
        %v635 = vcombine.low %v627, %v629
        %637 = vst [vmem:[%s389] sm:$0xff] %v635
        %v638 = vsel %vm585, %v627, 0.0
        %v639 = vsel %vm585, %v629, 0.0
        %v640 = vadd.f32 %v638, %v639
        %641 = vadd.xlane.f32.xlu0 %v640
        %v642 = vpop.xlane.xlu0 %641
        %vm643 = vcmask 3072
        %644 = vst.msk [vmem:[%s398] sm:$0xf] %vm643, %v642
        %v645 = vmul.f32 %v627, %v627
        %v646 = vmul.f32 %v629, %v629
        %v647 = vsel %vm585, %v645, 0.0
        %v648 = vsel %vm585, %v646, 0.0
        %v649 = vadd.f32 %v647, %v648
        %650 = vadd.xlane.f32.xlu0 %v649
        %v651 = vpop.xlane.xlu0 %650
        %652 = vst.msk [vmem:[%s406] sm:$0xf] %vm643, %v651
        %s653 = smul.u32 2, %s21
        %p654 = scmp.lt.s32.totalorder %s20, 0
        %s655 = scalar_select %p654, %s20, 0
        %p656 = scmp.lt.s32.totalorder %s653, 3
        %s657 = scalar_select %p656, %s653, 3
        %s658 = smul.addr %s655, 4
        %s659 = sadd.s32 %s657, %s658
        %s660 = smul.addr %s659, 4
        %s661 = scalar_lea.vmem %s2, %s660
        %p662 = scmp.lt.s32.totalorder %s20, 0
        %s663 = scalar_select %p662, %s20, 0
        %p664 = scmp.lt.s32.totalorder %s21, 1
        %s665 = scalar_select %p664, %s21, 1
        %s666 = smul.addr %s663, 2
        %s667 = sadd.s32 %s665, %s666
        %s668 = smul.addr %s667, 4
        %s669 = scalar_lea.vmem %s3, %s668
        %p670 = scmp.lt.s32.totalorder %s20, 0
        %s671 = scalar_select %p670, %s20, 0
        %p672 = scmp.lt.s32.totalorder %s21, 1
        %s673 = scalar_select %p672, %s21, 1
        %s674 = smul.addr %s671, 2
        %s675 = sadd.s32 %s673, %s674
        %s676 = smul.addr %s675, 4
        %s677 = scalar_lea.vmem %s4, %s676
        // Predicated region
        $region67: #{up_forward.4} parent=61 // pred_check
          %p678 = pneg %p97
        $region68: #{up_forward.4} parent=61 // pred_check_branch
          %680 = sbr.rel (%p678) target = $region70
        $region69: #{up_forward.4} parent=61 // pred_region
          %s681 = smul.u32 2, %s21
        $region70: #{up_forward.4} parent=61 // pred_fallthru
          _
        // Predicated region
        $region71: #{up_forward.4} parent=61 // pred_check
          %p682 = pneg %p125
        $region72: #{up_forward.4} parent=61 // pred_check_branch
          %684 = sbr.rel (%p682) target = $region74
        $region73: #{up_forward.4} parent=61 // pred_region
          _
        $region74: #{up_forward.4} parent=61 // pred_fallthru
          _
        // Predicated region
        $region75: #{up_forward.4} parent=61 // pred_check
          %p685 = pneg %p153
        $region76: #{up_forward.4} parent=61 // pred_check_branch
          %687 = sbr.rel (%p685) target = $region78
        $region77: #{up_forward.4} parent=61 // pred_region
          _
        $region78: #{up_forward.4} parent=61 // pred_fallthru
          _
      $region62: #{up_forward.4} parent=5 // pred_fallthru
        _
      %p688 = scmp.le.s32.totalorder 2, %s11
      // Predicated region
      $region79: #{up_forward.4} parent=5 // pred_check
        %p689 = pneg %p688
      $region80: #{up_forward.4} parent=5 // pred_check_branch
        %691 = sbr.rel (%p689) target = $region82
      $region81: #{up_forward.4} parent=5 // pred_region
        %s692 = ssub.s32 %s11, 2
        // Predicated region
        $region83: #{up_forward.4} parent=81 // pred_check
          %p693 = pneg %p103
        $region84: #{up_forward.4} parent=81 // pred_check_branch
          %695 = sbr.rel (%p693) target = $region86
        $region85: #{up_forward.4} parent=81 // pred_region
          %s696 = smul.u32 2, %s23
          %p697 = scmp.lt.s32.totalorder %s22, 0
          %s698 = scalar_select %p697, %s22, 0
          %p699 = scmp.lt.s32.totalorder %s696, 3
          %s700 = scalar_select %p699, %s696, 3
          %s701 = smul.addr %s698, 4
          %s702 = sadd.s32 %s700, %s701
          %s703 = smul.addr %s702, 4
          %s704 = scalar_lea.vmem %s2, %s703
        $region86: #{up_forward.4} parent=81 // pred_fallthru
          _
        // Predicated region
        $region87: #{up_forward.4} parent=81 // pred_check
          %p705 = pneg %p131
        $region88: #{up_forward.4} parent=81 // pred_check_branch
          %707 = sbr.rel (%p705) target = $region90
        $region89: #{up_forward.4} parent=81 // pred_region
          %p708 = scmp.lt.s32.totalorder %s22, 0
          %s709 = scalar_select %p708, %s22, 0
          %p710 = scmp.lt.s32.totalorder %s23, 1
          %s711 = scalar_select %p710, %s23, 1
          %s712 = smul.addr %s709, 2
          %s713 = sadd.s32 %s711, %s712
          %s714 = smul.addr %s713, 4
          %s715 = scalar_lea.vmem %s3, %s714
        $region90: #{up_forward.4} parent=81 // pred_fallthru
          _
        // Predicated region
        $region91: #{up_forward.4} parent=81 // pred_check
          %p716 = pneg %p159
        $region92: #{up_forward.4} parent=81 // pred_check_branch
          %718 = sbr.rel (%p716) target = $region94
        $region93: #{up_forward.4} parent=81 // pred_region
          %p719 = scmp.lt.s32.totalorder %s22, 0
          %s720 = scalar_select %p719, %s22, 0
          %p721 = scmp.lt.s32.totalorder %s23, 1
          %s722 = scalar_select %p721, %s23, 1
          %s723 = smul.addr %s720, 2
          %s724 = sadd.s32 %s722, %s723
          %s725 = smul.addr %s724, 4
          %s726 = scalar_lea.vmem %s4, %s725
        $region94: #{up_forward.4} parent=81 // pred_fallthru
          _
      $region82: #{up_forward.4} parent=5 // pred_fallthru
        _
    $region6: #{up_forward.4} parent=1 // loop_footer
      %s15 = sadd.s32 1, %s11
    $region7: #{up_forward.4} parent=1 // loop_footer_branch
      %10 = sbr.rel target = $region3
    $region8: #{up_forward.4} parent=1 // loop_exit
      _

// kernel: up_forward.6
$region0: #{up_forward.6}
  #allocation0 [shape = 'u32[]', space=smem, size = 0x4, offset = 0x4, fixed_abs, tag = 'smem constant byte address 0x4 - core index']
  #allocation1 [shape = 'u32[144,128]{1,0:T(1,128)}', space=vmem, size = 0x12000, scoped, tag = 'internal scratch']
  %s0 = inlined_call_operand.vmem [shape: bf16[1,108,512], index: 0, kind: input, shape index: {}]
  %s1 = inlined_call_operand.vmem [shape: bf16[8,108], index: 1, kind: input, shape index: {}]
  %s2 = inlined_call_operand.vmem [shape: f32[1,8,512], index: 2, kind: output, shape index: {0}]
  %s3 = inlined_call_operand.vmem [shape: f32[1,2,8,1], index: 3, kind: output, shape index: {1}]
  %s4 = inlined_call_operand.vmem [shape: f32[1,2,8,1], index: 4, kind: output, shape index: {2}]
  %5 = xla_tuple %s2, %s3, %s4
  %s6 = sld [smem:[#allocation0]]
  $region95: #{up_forward.6} parent=0
    _
  %s8 = ssub.s32 1, %s6
  %s9 = scalar_select 0, %s8, %s6
  $region1: #{up_forward.6} parent=0
    #allocation2 [shape = 'u8[114688]{0}', space=vmem, size = 0x1c000, scoped, tag = 'input window, operand 0']
    loop: start=0, step=1, limit=4
    $region2: #{up_forward.6} parent=1 // loop_pre_header
      _
    $region3: #{up_forward.6} parent=1 // loop_header
      %s11 = sphi 0, %s15
      %p12 = scmp.ge.s32.totalorder %s11, 4
      %s18 = sphi 0, %s30
      %s19 = sphi 0, %s26
      %s20 = sphi 0, %s18
      %s21 = sphi 0, %s19
      %s22 = sphi 0, %s20
      %s23 = sphi 0, %s21
      %s35 = sphi 0, %s37
      %s38 = sphi 0, %s35
      %s39 = sphi 0, %s38
      %s55 = sphi 0, %s39
      %s59 = sphi 0, %s59
      %s61 = sphi 0, %s59
      %s62 = sphi 0, %s61
      %s76 = sphi 0, %s62
      %s84 = sphi 0, %s86
      %s87 = sphi 0, %s84
      %s88 = sphi 0, %s87
      %s104 = sphi 0, %s88
      %s112 = sphi 0, %s114
      %s115 = sphi 0, %s112
      %s116 = sphi 0, %s115
      %s132 = sphi 0, %s116
      %s140 = sphi 0, %s142
      %s143 = sphi 0, %s140
      %s144 = sphi 0, %s143
      %s160 = sphi 0, %s144
    $region4: #{up_forward.6} parent=1 // loop_header_branch
      %14 = sbr.rel (%p12) target = $region8
    $region5: #{up_forward.6} parent=1 // loop_body
      %s16 = ssub.s32 %s11, 1
      %s17 = ssub.s32 %s11, 2
      %s24 = sadd.s32 1, %s19
      %p25 = scmp.ge.s32.totalorder %s24, 2
      %s26 = scalar_select %p25, 0, %s24
      %s27 = sadd.s32 1, %s18
      %s28 = scalar_select %p25, %s27, %s18
      %p29 = scmp.ge.s32.totalorder %s28, 1
      %s30 = scalar_select %p29, 0, %s28
      %s31 = ssub.s32 %s18, %s30
      %s32 = ssub.s32 %s19, %s26
      %s33 = sor.u32 %s31, %s32
      %p34 = scmp.eq.s32.totalorder %s33, 0
      %s36 = sadd.s32 %s35, 1
      %s37 = scalar_select %p34, %s35, %s36
      %p40 = pneg %p34
      %p41 = scmp.eq.s32.totalorder %s11, 1
      %p42 = por %p40, %p41
      %p43 = scmp.ne.s32.totalorder %s35, %s38
      %p44 = scmp.eq.s32.totalorder %s11, 0
      %p45 = por %p43, %p44
      %p46 = scmp.ne.s32.totalorder %s35, %s38
      %p47 = scmp.eq.s32.totalorder %s16, 1
      %p48 = por %p46, %p47
      %p49 = scmp.ne.s32.totalorder %s38, %s39
      %p50 = scmp.eq.s32.totalorder %s16, 0
      %p51 = por %p49, %p50
      %p52 = scmp.ne.s32.totalorder %s38, %s39
      %p53 = scmp.eq.s32.totalorder %s17, 1
      %p54 = por %p52, %p53
      %p56 = scmp.ne.s32.totalorder %s39, %s55
      %p57 = scmp.eq.s32.totalorder %s17, 0
      %p58 = por %p56, %p57
      %s60 = sadd.s32 %s59, 1
      %p63 = scmp.eq.s32.totalorder %s11, 1
      %p64 = scmp.ne.s32.totalorder %s59, %s61
      %p65 = scmp.eq.s32.totalorder %s11, 0
      %p66 = por %p64, %p65
      %p67 = scmp.ne.s32.totalorder %s59, %s61
      %p68 = scmp.eq.s32.totalorder %s16, 1
      %p69 = por %p67, %p68
      %p70 = scmp.ne.s32.totalorder %s61, %s62
      %p71 = scmp.eq.s32.totalorder %s16, 0
      %p72 = por %p70, %p71
      %p73 = scmp.ne.s32.totalorder %s61, %s62
      %p74 = scmp.eq.s32.totalorder %s17, 1
      %p75 = por %p73, %p74
      %p77 = scmp.ne.s32.totalorder %s62, %s76
      %p78 = scmp.eq.s32.totalorder %s17, 0
      %p79 = por %p77, %p78
      %s80 = ssub.s32 %s18, %s30
      %s81 = ssub.s32 %s19, %s26
      %s82 = sor.u32 %s80, %s81
      %p83 = scmp.eq.s32.totalorder %s82, 0
      %s85 = sadd.s32 %s84, 1
      %s86 = scalar_select %p83, %s84, %s85
      %p89 = pneg %p83
      %p90 = scmp.eq.s32.totalorder %s11, 1
      %p91 = por %p89, %p90
      %p92 = scmp.ne.s32.totalorder %s84, %s87
      %p93 = scmp.eq.s32.totalorder %s11, 0
      %p94 = por %p92, %p93
      %p95 = scmp.ne.s32.totalorder %s84, %s87
      %p96 = scmp.eq.s32.totalorder %s16, 1
      %p97 = por %p95, %p96
      %p98 = scmp.ne.s32.totalorder %s87, %s88
      %p99 = scmp.eq.s32.totalorder %s16, 0
      %p100 = por %p98, %p99
      %p101 = scmp.ne.s32.totalorder %s87, %s88
      %p102 = scmp.eq.s32.totalorder %s17, 1
      %p103 = por %p101, %p102
      %p105 = scmp.ne.s32.totalorder %s88, %s104
      %p106 = scmp.eq.s32.totalorder %s17, 0
      %p107 = por %p105, %p106
      %s108 = ssub.s32 %s18, %s30
      %s109 = ssub.s32 %s19, %s26
      %s110 = sor.u32 %s108, %s109
      %p111 = scmp.eq.s32.totalorder %s110, 0
      %s113 = sadd.s32 %s112, 1
      %s114 = scalar_select %p111, %s112, %s113
      %p117 = pneg %p111
      %p118 = scmp.eq.s32.totalorder %s11, 1
      %p119 = por %p117, %p118
      %p120 = scmp.ne.s32.totalorder %s112, %s115
      %p121 = scmp.eq.s32.totalorder %s11, 0
      %p122 = por %p120, %p121
      %p123 = scmp.ne.s32.totalorder %s112, %s115
      %p124 = scmp.eq.s32.totalorder %s16, 1
      %p125 = por %p123, %p124
      %p126 = scmp.ne.s32.totalorder %s115, %s116
      %p127 = scmp.eq.s32.totalorder %s16, 0
      %p128 = por %p126, %p127
      %p129 = scmp.ne.s32.totalorder %s115, %s116
      %p130 = scmp.eq.s32.totalorder %s17, 1
      %p131 = por %p129, %p130
      %p133 = scmp.ne.s32.totalorder %s116, %s132
      %p134 = scmp.eq.s32.totalorder %s17, 0
      %p135 = por %p133, %p134
      %s136 = ssub.s32 %s18, %s30
      %s137 = ssub.s32 %s19, %s26
      %s138 = sor.u32 %s136, %s137
      %p139 = scmp.eq.s32.totalorder %s138, 0
      %s141 = sadd.s32 %s140, 1
      %s142 = scalar_select %p139, %s140, %s141
      %p145 = pneg %p139
      %p146 = scmp.eq.s32.totalorder %s11, 1
      %p147 = por %p145, %p146
      %p148 = scmp.ne.s32.totalorder %s140, %s143
      %p149 = scmp.eq.s32.totalorder %s11, 0
      %p150 = por %p148, %p149
      %p151 = scmp.ne.s32.totalorder %s140, %s143
      %p152 = scmp.eq.s32.totalorder %s16, 1
      %p153 = por %p151, %p152
      %p154 = scmp.ne.s32.totalorder %s143, %s144
      %p155 = scmp.eq.s32.totalorder %s16, 0
      %p156 = por %p154, %p155
      %p157 = scmp.ne.s32.totalorder %s143, %s144
      %p158 = scmp.eq.s32.totalorder %s17, 1
      %p159 = por %p157, %p158
      %p161 = scmp.ne.s32.totalorder %s144, %s160
      %p162 = scmp.eq.s32.totalorder %s17, 0
      %p163 = por %p161, %p162
      %p164 = scmp.le.s32.totalorder 1, %s11
      %p165 = scmp.lt.s32.totalorder %s11, 3
      %p166 = pnand %p164, %p165
      %p167 = pneg %p166
      // Predicated region
      $region9: #{up_forward.6} parent=5 // pred_check
        _
      $region10: #{up_forward.6} parent=5 // pred_check_branch
        %169 = sbr.rel (%p166) target = $region12
      $region11: #{up_forward.6} parent=5 // pred_region
        %s170 = ssub.s32 %s11, 1
        // Predicated region
        $region13: #{up_forward.6} parent=11 // pred_check
          %p171 = pneg %p72
        $region14: #{up_forward.6} parent=11 // pred_check_branch
          %173 = sbr.rel (%p171) target = $region16
        $region15: #{up_forward.6} parent=11 // pred_region
          _
        $region16: #{up_forward.6} parent=11 // pred_fallthru
          _
      $region12: #{up_forward.6} parent=5 // pred_fallthru
        _
      %p174 = scmp.lt.s32.totalorder %s11, 2
      // Predicated region
      $region17: #{up_forward.6} parent=5 // pred_check
        %p175 = pneg %p174
      $region18: #{up_forward.6} parent=5 // pred_check_branch
        %177 = sbr.rel (%p175) target = $region20
      $region19: #{up_forward.6} parent=5 // pred_region
        // Predicated region
        $region21: #{up_forward.6} parent=19 // pred_check
          %p178 = pneg %p45
        $region22: #{up_forward.6} parent=19 // pred_check_branch
          %180 = sbr.rel (%p178) target = $region24
        $region23: #{up_forward.6} parent=19 // pred_region
          %s181 = sand.u32 %s35, 1
          %s182 = sand.u32 %s35, 1
          %s183 = smul.addr %s182, 112
          %s184 = scalar_lea.vmem [#allocation2], %s183
          %s185 = smul.u32 2, %s19
          %s186 = smul.addr %s18, 56
          %s187 = sadd.s32 %s185, %s186
          %s188 = smul.addr %s187, 4
          %s189 = scalar_lea.vmem %s0, %s188
          // Predicated region
          $region25: #{up_forward.6} parent=23 // pred_check
            _
          $region26: #{up_forward.6} parent=23 // pred_check_branch
            %191 = sbr.rel (0) target = $region28
          $region27: #{up_forward.6} parent=23 // pred_region
            // Predicated region
            $region29: #{up_forward.6} parent=27 // pred_check
              _
            $region30: #{up_forward.6} parent=27 // pred_check_branch
              %193 = sbr.rel (0) target = $region32
            $region31: #{up_forward.6} parent=27 // pred_region
              // Predicated region
              $region44: #{up_forward.6} parent=31 // pred_check
                _
              $region45: #{up_forward.6} parent=31 // pred_check_branch
                %235 = sbr.rel (0) target = $region47
              $region46: #{up_forward.6} parent=31 // pred_region
                loop: start=0, step=1, limit=1
                $region48: #{up_forward.6} parent=46 // loop_pre_header
                  _
                $region49: #{up_forward.6} parent=46 // loop_header
                  %s237 = sphi 0, %s241
                  %p238 = scmp.ge.s32.totalorder %s237, 1
                  %s242 = sphi %s189, %s189
                  %s243 = sphi %s184, %s184
                $region50: #{up_forward.6} parent=46 // loop_header_branch
                  %240 = sbr.rel (%p238) target = $region54
                $region51: #{up_forward.6} parent=46 // loop_body
                  %v244 = vld [vmem:[%s242] sm:$0xff]
                  %245 = vst [vmem:[%s243] sm:$0xff] %v244
                  %v246 = vld [vmem:[%s242 + $0x10] sm:$0xff]
                  %247 = vst [vmem:[%s243 + $0x8] sm:$0xff] %v246
                  %v248 = vld [vmem:[%s242 + $0x20] sm:$0xff]
                  %249 = vst [vmem:[%s243 + $0x10] sm:$0xff] %v248
                  %v250 = vld [vmem:[%s242 + $0x30] sm:$0xff]
                  %251 = vst [vmem:[%s243 + $0x18] sm:$0xff] %v250
                  %v252 = vld [vmem:[%s242 + $0x40] sm:$0xff]
                  %253 = vst [vmem:[%s243 + $0x20] sm:$0xff] %v252
                  %v254 = vld [vmem:[%s242 + $0x50] sm:$0xff]
                  %255 = vst [vmem:[%s243 + $0x28] sm:$0xff] %v254
                  %v256 = vld [vmem:[%s242 + $0x60] sm:$0xff]
                  %257 = vst [vmem:[%s243 + $0x30] sm:$0xff] %v256
                  %v258 = vld [vmem:[%s242 + $0x70] sm:$0xff]
                  %259 = vst [vmem:[%s243 + $0x38] sm:$0xff] %v258
                  %v260 = vld [vmem:[%s242 + $0x80] sm:$0xff]
                  %261 = vst [vmem:[%s243 + $0x40] sm:$0xff] %v260
                  %v262 = vld [vmem:[%s242 + $0x90] sm:$0xff]
                  %263 = vst [vmem:[%s243 + $0x48] sm:$0xff] %v262
                  %v264 = vld [vmem:[%s242 + $0xa0] sm:$0xff]
                  %265 = vst [vmem:[%s243 + $0x50] sm:$0xff] %v264
                  %v266 = vld [vmem:[%s242 + $0xb0] sm:$0xff]
                  %267 = vst [vmem:[%s243 + $0x58] sm:$0xff] %v266
                  %v268 = vld [vmem:[%s242 + $0xc0] sm:$0xff]
                  %269 = vst [vmem:[%s243 + $0x60] sm:$0xff] %v268
                  %v270 = vld [vmem:[%s242 + $0xd0] sm:$0xff]
                  %271 = vst [vmem:[%s243 + $0x68] sm:$0xff] %v270
                $region52: #{up_forward.6} parent=46 // loop_footer
                  %s241 = sadd.s32 1, %s237
                $region53: #{up_forward.6} parent=46 // loop_footer_branch
                  %236 = sbr.rel target = $region49
                $region54: #{up_forward.6} parent=46 // loop_exit
                  _
              $region47: #{up_forward.6} parent=31 // pred_fallthru
                _
              // Predicated region
              $region55: #{up_forward.6} parent=31 // pred_check
                _
              $region56: #{up_forward.6} parent=31 // pred_check_branch
                %273 = sbr.rel target = $region58
              $region57: #{up_forward.6} parent=31 // pred_region
                _
              $region58: #{up_forward.6} parent=31 // pred_fallthru
                _
            $region32: #{up_forward.6} parent=27 // pred_fallthru
              _
            // Predicated region
            $region33: #{up_forward.6} parent=27 // pred_check
              _
            $region34: #{up_forward.6} parent=27 // pred_check_branch
              %195 = sbr.rel target = $region36
            $region35: #{up_forward.6} parent=27 // pred_region
              %s197 = ssub.s32 256, 1
              loop: start=0, step=1, limit=1
              $region37: #{up_forward.6} parent=35 // loop_pre_header
                _
              $region38: #{up_forward.6} parent=35 // loop_header
                %s199 = sphi 0, %s203
                %p200 = scmp.ge.s32.totalorder %s199, 1
                %s204 = sphi %s189, %s189
                %s205 = sphi %s184, %s184
              $region39: #{up_forward.6} parent=35 // loop_header_branch
                %202 = sbr.rel (%p200) target = $region43
              $region40: #{up_forward.6} parent=35 // loop_body
                %v206 = vld [vmem:[%s204] sm:%s197]
                %207 = vst [vmem:[%s205] sm:%s197] %v206
                %v208 = vld [vmem:[%s204 + $0x10] sm:%s197]
                %209 = vst [vmem:[%s205 + $0x8] sm:%s197] %v208
                %v210 = vld [vmem:[%s204 + $0x20] sm:%s197]
                %211 = vst [vmem:[%s205 + $0x10] sm:%s197] %v210
                %v212 = vld [vmem:[%s204 + $0x30] sm:%s197]
                %213 = vst [vmem:[%s205 + $0x18] sm:%s197] %v212
                %v214 = vld [vmem:[%s204 + $0x40] sm:%s197]
                %215 = vst [vmem:[%s205 + $0x20] sm:%s197] %v214
                %v216 = vld [vmem:[%s204 + $0x50] sm:%s197]
                %217 = vst [vmem:[%s205 + $0x28] sm:%s197] %v216
                %v218 = vld [vmem:[%s204 + $0x60] sm:%s197]
                %219 = vst [vmem:[%s205 + $0x30] sm:%s197] %v218
                %v220 = vld [vmem:[%s204 + $0x70] sm:%s197]
                %221 = vst [vmem:[%s205 + $0x38] sm:%s197] %v220
                %v222 = vld [vmem:[%s204 + $0x80] sm:%s197]
                %223 = vst [vmem:[%s205 + $0x40] sm:%s197] %v222
                %v224 = vld [vmem:[%s204 + $0x90] sm:%s197]
                %225 = vst [vmem:[%s205 + $0x48] sm:%s197] %v224
                %v226 = vld [vmem:[%s204 + $0xa0] sm:%s197]
                %227 = vst [vmem:[%s205 + $0x50] sm:%s197] %v226
                %v228 = vld [vmem:[%s204 + $0xb0] sm:%s197]
                %229 = vst [vmem:[%s205 + $0x58] sm:%s197] %v228
                %v230 = vld [vmem:[%s204 + $0xc0] sm:%s197]
                %231 = vst [vmem:[%s205 + $0x60] sm:%s197] %v230
                %v232 = vld [vmem:[%s204 + $0xd0] sm:%s197]
                %233 = vst [vmem:[%s205 + $0x68] sm:%s197] %v232
              $region41: #{up_forward.6} parent=35 // loop_footer
                %s203 = sadd.s32 1, %s199
              $region42: #{up_forward.6} parent=35 // loop_footer_branch
                %198 = sbr.rel target = $region38
              $region43: #{up_forward.6} parent=35 // loop_exit
                _
            $region36: #{up_forward.6} parent=27 // pred_fallthru
              _
          $region28: #{up_forward.6} parent=23 // pred_fallthru
            _
          %274 = vnop
        $region24: #{up_forward.6} parent=19 // pred_fallthru
          _
      $region20: #{up_forward.6} parent=5 // pred_fallthru
        _
      %p275 = scmp.le.s32.totalorder 1, %s11
      %p276 = scmp.lt.s32.totalorder %s11, 3
      %p277 = pnand %p275, %p276
      %p278 = pneg %p277
      // Predicated region
      $region59: #{up_forward.6} parent=5 // pred_check
        _
      $region60: #{up_forward.6} parent=5 // pred_check_branch
        %280 = sbr.rel (%p277) target = $region62
      $region61: #{up_forward.6} parent=5 // pred_region
        %s281 = ssub.s32 %s11, 1
        %s282 = sand.u32 %s38, 1
        %s283 = sand.u32 %s38, 1
        %s284 = smul.addr %s283, 112
        %s285 = scalar_lea.vmem [#allocation2], %s284
        // Predicated region
        $region63: #{up_forward.6} parent=61 // pred_check
          %p286 = pneg %p51
        $region64: #{up_forward.6} parent=61 // pred_check_branch
          %288 = sbr.rel (%p286) target = $region66
        $region65: #{up_forward.6} parent=61 // pred_region
          _
        $region66: #{up_forward.6} parent=61 // pred_fallthru
          _
        %s289 = sand.u32 %s38, 1
        %s290 = sand.u32 %s38, 1
        %s291 = smul.addr %s290, 112
        %s292 = scalar_lea.vmem [#allocation2], %s291
        %p293 = pneg %p51
        %p294 = pneg %p48
        %p295 = pneg %p72
        %p296 = pneg %p69
        %p297 = pneg %p100
        %p298 = pneg %p97
        %s299 = smul.u32 2, %s21
        %p300 = scmp.lt.s32.totalorder %s20, 0
        %s301 = scalar_select %p300, %s20, 0
        %p302 = scmp.lt.s32.totalorder %s299, 3
        %s303 = scalar_select %p302, %s299, 3
        %s304 = smul.addr %s301, 4
        %s305 = sadd.s32 %s303, %s304
        %s306 = smul.addr %s305, 8
        %s307 = scalar_lea.vmem %s2, %s306
        %p308 = pneg %p128
        %p309 = pneg %p125
        %p310 = scmp.lt.s32.totalorder %s20, 0
        %s311 = scalar_select %p310, %s20, 0
        %p312 = scmp.lt.s32.totalorder %s21, 1
        %s313 = scalar_select %p312, %s21, 1
        %s314 = smul.addr %s311, 2
        %s315 = sadd.s32 %s313, %s314
        %s316 = smul.addr %s315, 8
        %s317 = scalar_lea.vmem %s3, %s316
        %p318 = pneg %p156
        %p319 = pneg %p153
        %p320 = scmp.lt.s32.totalorder %s20, 0
        %s321 = scalar_select %p320, %s20, 0
        %p322 = scmp.lt.s32.totalorder %s21, 1
        %s323 = scalar_select %p322, %s21, 1
        %s324 = smul.addr %s321, 2
        %s325 = sadd.s32 %s323, %s324
        %s326 = smul.addr %s325, 8
        %s327 = scalar_lea.vmem %s4, %s326
        %s328 = smul.u32 2, %s21
        %s329 = smul.u32 2, %s21
        %p330 = scmp.lt.s32.totalorder %s20, 0
        %s331 = scalar_select %p330, %s20, 0
        %p332 = scmp.lt.s32.totalorder %s329, 3
        %s333 = scalar_select %p332, %s329, 3
        %s334 = smul.addr %s331, 4
        %s335 = sadd.s32 %s333, %s334
        %s336 = smul.addr %s335, 8
        %s337 = scalar_lea.vmem %s2, %s336
        %s338 = smul.u32 2, %s21
        %p339 = scmp.lt.s32.totalorder %s20, 0
        %s340 = scalar_select %p339, %s20, 0
        %p341 = scmp.lt.s32.totalorder %s21, 1
        %s342 = scalar_select %p341, %s21, 1
        %s343 = smul.addr %s340, 2
        %s344 = sadd.s32 %s342, %s343
        %s345 = smul.addr %s344, 8
        %s346 = scalar_lea.vmem %s3, %s345
        %p347 = scmp.lt.s32.totalorder %s20, 0
        %s348 = scalar_select %p347, %s20, 0
        %p349 = scmp.lt.s32.totalorder %s21, 1
        %s350 = scalar_select %p349, %s21, 1
        %s351 = smul.addr %s348, 2
        %s352 = sadd.s32 %s350, %s351
        %s353 = smul.addr %s352, 8
        %s354 = scalar_lea.vmem %s4, %s353
        %v356 = vld [vmem:[%s1] sm:$0xf]
        %v357 = vld [vmem:[%s285] sm:$0xff]
        %v358 = vld [vmem:[%s285 + $0x8] sm:$0xff]
        %v359 = vld [vmem:[%s285 + $0x10] sm:$0xff]
        %v360 = vld [vmem:[%s285 + $0x18] sm:$0xff]
        %v361 = vld [vmem:[%s285 + $0x20] sm:$0xff]
        %v362 = vld [vmem:[%s285 + $0x28] sm:$0xff]
        %v363 = vld [vmem:[%s285 + $0x30] sm:$0xff]
        %v364 = vld [vmem:[%s285 + $0x38] sm:$0xff]
        %v365 = vld [vmem:[%s285 + $0x40] sm:$0xff]
        %v366 = vld [vmem:[%s285 + $0x48] sm:$0xff]
        %v367 = vld [vmem:[%s285 + $0x50] sm:$0xff]
        %v368 = vld [vmem:[%s285 + $0x58] sm:$0xff]
        %v369 = vld [vmem:[%s285 + $0x60] sm:$0xff]
        %v370 = vld [vmem:[%s285 + $0x68] sm:$0x33]
        %v385 = vunpack.c.l.b16 %v357
        %v386 = vunpack.c.h.b16 %v357
        %v387 = vunpack.c.l.b16 %v358
        %v388 = vunpack.c.h.b16 %v358
        %v389 = vunpack.c.l.b16 %v359
        %v390 = vunpack.c.h.b16 %v359
        %v391 = vunpack.c.l.b16 %v360
        %v392 = vunpack.c.h.b16 %v360
        %v393 = vunpack.c.l.b16 %v361
        %v394 = vunpack.c.h.b16 %v361
        %v395 = vunpack.c.l.b16 %v362
        %v396 = vunpack.c.h.b16 %v362
        %v397 = vunpack.c.l.b16 %v363
        %v398 = vunpack.c.h.b16 %v363
        %v399 = vunpack.c.l.b16 %v364
        %v400 = vunpack.c.h.b16 %v364
        %v401 = vunpack.c.l.b16 %v365
        %v402 = vunpack.c.h.b16 %v365
        %v403 = vunpack.c.l.b16 %v366
        %v404 = vunpack.c.h.b16 %v366
        %v405 = vunpack.c.l.b16 %v367
        %v406 = vunpack.c.h.b16 %v367
        %v407 = vunpack.c.l.b16 %v368
        %v408 = vunpack.c.h.b16 %v368
        %v409 = vunpack.c.l.b16 %v369
        %v410 = vunpack.c.h.b16 %v369
        %v411 = vunpack.c.l.b16 %v370
        %v412 = vunpack.c.h.b16 %v370
        %v413 = vpack.c.b16 %v387, %v385
        %v414 = vpack.c.b16 %v388, %v386
        %v415 = vpack.c.b16 %v391, %v389
        %v416 = vpack.c.b16 %v392, %v390
        %v417 = vpack.c.b16 %v395, %v393
        %v418 = vpack.c.b16 %v396, %v394
        %v419 = vpack.c.b16 %v399, %v397
        %v420 = vpack.c.b16 %v400, %v398
        %v421 = vpack.c.b16 %v403, %v401
        %v422 = vpack.c.b16 %v404, %v402
        %v423 = vpack.c.b16 %v407, %v405
        %v424 = vpack.c.b16 %v408, %v406
        %v425 = vpack.c.b16 %v411, %v409
        %v426 = vpack.c.b16 %v412, %v410
        %vm439 = vcmask 883712
        %v441 = vsel %vm439, %v356, 0
        %vm443 = vcmask 1045504
        %v445 = vsel %vm443, %v425, 0
        %v448 = vsel %vm443, %v426, 0
        %450 = vmatprep.subr.bf16.mxu0 0
        %451 = vmatpush1.bf16.msra.mxu0 0
        %452 = vmatprep.subr.bf16.mxu0 %v448
        %453 = vmatpush1.bf16.msra.mxu0 %v445
        %454 = vmatprep.subr.bf16.mxu0 %v424
        %455 = vmatpush1.bf16.msra.mxu0 %v423
        %456 = vmatprep.subr.bf16.mxu0 %v422
        %457 = vmatpush1.bf16.msra.mxu0 %v421
        %458 = vmatprep.subr.bf16.mxu0 %v420
        %459 = vmatpush1.bf16.msra.mxu0 %v419
        %460 = vmatprep.subr.bf16.mxu0 %v418
        %461 = vmatpush1.bf16.msra.mxu0 %v417
        %462 = vmatprep.subr.bf16.mxu0 %v416
        %463 = vmatpush1.bf16.msra.mxu0 %v415
        %464 = vmatprep.subr.bf16.mxu0 %v414
        %465 = vmatpush1.bf16.msra.mxu0 %v413
        %466 = vmatprep.subr.bf16.mxu0 0
        %467 = vmatpush2.bf16.msra.mxu0 0
        %468 = vmatprep.subr.bf16.mxu0 0
        %469 = vmatpush2.bf16.msra.mxu0 0
        %470 = vmatprep.subr.bf16.mxu0 0
        %471 = vmatpush2.bf16.msra.mxu0 0
        %472 = vmatprep.subr.bf16.mxu0 0
        %473 = vmatpush2.bf16.msra.mxu0 0
        %474 = vmatprep.subr.bf16.mxu0 0
        %475 = vmatpush2.bf16.msra.mxu0 0
        %476 = vmatprep.subr.bf16.mxu0 0
        %477 = vmatpush2.bf16.msra.mxu0 0
        %478 = vmatprep.subr.bf16.mxu0 0
        %479 = vmatpush2.bf16.msra.mxu0 0
        %480 = vmatprep.subr.bf16.mxu0 0
        %481 = vmatpush2.bf16.msra.mxu0 0
        %482 = vmatprep.mubr.bf16.mxu0 0
        %483 = vmatmul.mubr.bf16.gmra.mxu0 %v441
        %v484 = vpop.f32.mrf.mxu0
        %v485 = vadd.f32 0.0, %v484
        %v486 = vpop.f32.mrf.mxu0
        %v487 = vadd.f32 0.0, %v486
        %v488 = vpop.f32.mrf.mxu0
        %v489 = vpop.f32.mrf.mxu0
        %490 = vdwg.mxu0
        %491 = vst [vmem:[%s337] sm:$0xff] %v485
        %492 = vst [vmem:[%s337 + $0x8] sm:$0xff] %v487
        %v493 = vadd.f32 %v485, %v487
        %494 = vadd.xlane.f32.xlu0 %v493
        %v495 = vpop.xlane.xlu0 %494
        %vm496 = vcmask 7168
        %497 = vst.msk [vmem:[%s346] sm:$0xff] %vm496, %v495
        %v498 = vmul.f32 %v485, %v485
        %v499 = vmul.f32 %v487, %v487
        %v500 = vadd.f32 %v498, %v499
        %501 = vadd.xlane.f32.xlu0 %v500
        %v502 = vpop.xlane.xlu0 %501
        %503 = vst.msk [vmem:[%s354] sm:$0xff] %vm496, %v502
        %s504 = smul.u32 2, %s21
        %p505 = scmp.lt.s32.totalorder %s20, 0
        %s506 = scalar_select %p505, %s20, 0
        %p507 = scmp.lt.s32.totalorder %s504, 3
        %s508 = scalar_select %p507, %s504, 3
        %s509 = smul.addr %s506, 4
        %s510 = sadd.s32 %s508, %s509
        %s511 = smul.addr %s510, 8
        %s512 = scalar_lea.vmem %s2, %s511
        %p513 = scmp.lt.s32.totalorder %s20, 0
        %s514 = scalar_select %p513, %s20, 0
        %p515 = scmp.lt.s32.totalorder %s21, 1
        %s516 = scalar_select %p515, %s21, 1
        %s517 = smul.addr %s514, 2
        %s518 = sadd.s32 %s516, %s517
        %s519 = smul.addr %s518, 8
        %s520 = scalar_lea.vmem %s3, %s519
        %p521 = scmp.lt.s32.totalorder %s20, 0
        %s522 = scalar_select %p521, %s20, 0
        %p523 = scmp.lt.s32.totalorder %s21, 1
        %s524 = scalar_select %p523, %s21, 1
        %s525 = smul.addr %s522, 2
        %s526 = sadd.s32 %s524, %s525
        %s527 = smul.addr %s526, 8
        %s528 = scalar_lea.vmem %s4, %s527
        // Predicated region
        $region67: #{up_forward.6} parent=61 // pred_check
          %p529 = pneg %p97
        $region68: #{up_forward.6} parent=61 // pred_check_branch
          %531 = sbr.rel (%p529) target = $region70
        $region69: #{up_forward.6} parent=61 // pred_region
          %s532 = smul.u32 2, %s21
        $region70: #{up_forward.6} parent=61 // pred_fallthru
          _
        // Predicated region
        $region71: #{up_forward.6} parent=61 // pred_check
          %p533 = pneg %p125
        $region72: #{up_forward.6} parent=61 // pred_check_branch
          %535 = sbr.rel (%p533) target = $region74
        $region73: #{up_forward.6} parent=61 // pred_region
          _
        $region74: #{up_forward.6} parent=61 // pred_fallthru
          _
        // Predicated region
        $region75: #{up_forward.6} parent=61 // pred_check
          %p536 = pneg %p153
        $region76: #{up_forward.6} parent=61 // pred_check_branch
          %538 = sbr.rel (%p536) target = $region78
        $region77: #{up_forward.6} parent=61 // pred_region
          _
        $region78: #{up_forward.6} parent=61 // pred_fallthru
          _
      $region62: #{up_forward.6} parent=5 // pred_fallthru
        _
      %p539 = scmp.le.s32.totalorder 2, %s11
      // Predicated region
      $region79: #{up_forward.6} parent=5 // pred_check
        %p540 = pneg %p539
      $region80: #{up_forward.6} parent=5 // pred_check_branch
        %542 = sbr.rel (%p540) target = $region82
      $region81: #{up_forward.6} parent=5 // pred_region
        %s543 = ssub.s32 %s11, 2
        // Predicated region
        $region83: #{up_forward.6} parent=81 // pred_check
          %p544 = pneg %p103
        $region84: #{up_forward.6} parent=81 // pred_check_branch
          %546 = sbr.rel (%p544) target = $region86
        $region85: #{up_forward.6} parent=81 // pred_region
          %s547 = smul.u32 2, %s23
          %p548 = scmp.lt.s32.totalorder %s22, 0
          %s549 = scalar_select %p548, %s22, 0
          %p550 = scmp.lt.s32.totalorder %s547, 3
          %s551 = scalar_select %p550, %s547, 3
          %s552 = smul.addr %s549, 4
          %s553 = sadd.s32 %s551, %s552
          %s554 = smul.addr %s553, 8
          %s555 = scalar_lea.vmem %s2, %s554
        $region86: #{up_forward.6} parent=81 // pred_fallthru
          _
        // Predicated region
        $region87: #{up_forward.6} parent=81 // pred_check
          %p556 = pneg %p131
        $region88: #{up_forward.6} parent=81 // pred_check_branch
          %558 = sbr.rel (%p556) target = $region90
        $region89: #{up_forward.6} parent=81 // pred_region
          %p559 = scmp.lt.s32.totalorder %s22, 0
          %s560 = scalar_select %p559, %s22, 0
          %p561 = scmp.lt.s32.totalorder %s23, 1
          %s562 = scalar_select %p561, %s23, 1
          %s563 = smul.addr %s560, 2
          %s564 = sadd.s32 %s562, %s563
          %s565 = smul.addr %s564, 8
          %s566 = scalar_lea.vmem %s3, %s565
        $region90: #{up_forward.6} parent=81 // pred_fallthru
          _
        // Predicated region
        $region91: #{up_forward.6} parent=81 // pred_check
          %p567 = pneg %p159
        $region92: #{up_forward.6} parent=81 // pred_check_branch
          %569 = sbr.rel (%p567) target = $region94
        $region93: #{up_forward.6} parent=81 // pred_region
          %p570 = scmp.lt.s32.totalorder %s22, 0
          %s571 = scalar_select %p570, %s22, 0
          %p572 = scmp.lt.s32.totalorder %s23, 1
          %s573 = scalar_select %p572, %s23, 1
          %s574 = smul.addr %s571, 2
          %s575 = sadd.s32 %s573, %s574
          %s576 = smul.addr %s575, 8
          %s577 = scalar_lea.vmem %s4, %s576
        $region94: #{up_forward.6} parent=81 // pred_fallthru
          _
      $region82: #{up_forward.6} parent=5 // pred_fallthru
        _
    $region6: #{up_forward.6} parent=1 // loop_footer
      %s15 = sadd.s32 1, %s11
    $region7: #{up_forward.6} parent=1 // loop_footer_branch
      %10 = sbr.rel target = $region3
    $region8: #{up_forward.6} parent=1 // loop_exit
      _

// kernel: up_forward.7
$region0: #{up_forward.7}
  #allocation0 [shape = 'u32[]', space=smem, size = 0x4, offset = 0x4, fixed_abs, tag = 'smem constant byte address 0x4 - core index']
  #allocation1 [shape = 'u32[144,128]{1,0:T(1,128)}', space=vmem, size = 0x12000, scoped, tag = 'internal scratch']
  %s0 = inlined_call_operand.vmem [shape: f32[1,8,512], index: 0, kind: input, shape index: {}]
  %s1 = inlined_call_operand.vmem [shape: f32[8,1], index: 1, kind: input, shape index: {}]
  %s2 = inlined_call_operand.vmem [shape: f32[8,1], index: 2, kind: input, shape index: {}]
  %s3 = inlined_call_operand.vmem [shape: f32[1,8,512], index: 3, kind: output, shape index: {}]
  %s4 = sld [smem:[#allocation0]]
  $region45: #{up_forward.7} parent=0
    _
  %s6 = ssub.s32 1, %s4
  %s7 = scalar_select 0, %s6, %s4
  loop: start=0, step=1, limit=4
  $region2: #{up_forward.7} parent=0 // loop_pre_header
    _
  $region3: #{up_forward.7} parent=0 // loop_header
    %s9 = sphi 0, %s13
    %p10 = scmp.ge.s32.totalorder %s9, 4
    %s16 = sphi 0, %s28
    %s17 = sphi 0, %s24
    %s18 = sphi 0, %s16
    %s19 = sphi 0, %s17
    %s20 = sphi 0, %s18
    %s21 = sphi 0, %s19
    %s33 = sphi 0, %s35
    %s36 = sphi 0, %s33
    %s37 = sphi 0, %s36
    %s53 = sphi 0, %s37
    %s57 = sphi 0, %s57
    %s59 = sphi 0, %s57
    %s60 = sphi 0, %s59
    %s74 = sphi 0, %s60
    %s78 = sphi 0, %s78
    %s80 = sphi 0, %s78
    %s81 = sphi 0, %s80
    %s95 = sphi 0, %s81
    %s103 = sphi 0, %s105
    %s106 = sphi 0, %s103
    %s107 = sphi 0, %s106
    %s123 = sphi 0, %s107
  $region4: #{up_forward.7} parent=0 // loop_header_branch
    %12 = sbr.rel (%p10) target = $region8
  $region5: #{up_forward.7} parent=0 // loop_body
    %s14 = ssub.s32 %s9, 1
    %s15 = ssub.s32 %s9, 2
    %s22 = sadd.s32 1, %s17
    %p23 = scmp.ge.s32.totalorder %s22, 2
    %s24 = scalar_select %p23, 0, %s22
    %s25 = sadd.s32 1, %s16
    %s26 = scalar_select %p23, %s25, %s16
    %p27 = scmp.ge.s32.totalorder %s26, 1
    %s28 = scalar_select %p27, 0, %s26
    %s29 = ssub.s32 %s16, %s28
    %s30 = ssub.s32 %s17, %s24
    %s31 = sor.u32 %s29, %s30
    %p32 = scmp.eq.s32.totalorder %s31, 0
    %s34 = sadd.s32 %s33, 1
    %s35 = scalar_select %p32, %s33, %s34
    %p38 = pneg %p32
    %p39 = scmp.eq.s32.totalorder %s9, 1
    %p40 = por %p38, %p39
    %p41 = scmp.ne.s32.totalorder %s33, %s36
    %p42 = scmp.eq.s32.totalorder %s9, 0
    %p43 = por %p41, %p42
    %p44 = scmp.ne.s32.totalorder %s33, %s36
    %p45 = scmp.eq.s32.totalorder %s14, 1
    %p46 = por %p44, %p45
    %p47 = scmp.ne.s32.totalorder %s36, %s37
    %p48 = scmp.eq.s32.totalorder %s14, 0
    %p49 = por %p47, %p48
    %p50 = scmp.ne.s32.totalorder %s36, %s37
    %p51 = scmp.eq.s32.totalorder %s15, 1
    %p52 = por %p50, %p51
    %p54 = scmp.ne.s32.totalorder %s37, %s53
    %p55 = scmp.eq.s32.totalorder %s15, 0
    %p56 = por %p54, %p55
    %s58 = sadd.s32 %s57, 1
    %p61 = scmp.eq.s32.totalorder %s9, 1
    %p62 = scmp.ne.s32.totalorder %s57, %s59
    %p63 = scmp.eq.s32.totalorder %s9, 0
    %p64 = por %p62, %p63
    %p65 = scmp.ne.s32.totalorder %s57, %s59
    %p66 = scmp.eq.s32.totalorder %s14, 1
    %p67 = por %p65, %p66
    %p68 = scmp.ne.s32.totalorder %s59, %s60
    %p69 = scmp.eq.s32.totalorder %s14, 0
    %p70 = por %p68, %p69
    %p71 = scmp.ne.s32.totalorder %s59, %s60
    %p72 = scmp.eq.s32.totalorder %s15, 1
    %p73 = por %p71, %p72
    %p75 = scmp.ne.s32.totalorder %s60, %s74
    %p76 = scmp.eq.s32.totalorder %s15, 0
    %p77 = por %p75, %p76
    %s79 = sadd.s32 %s78, 1
    %p82 = scmp.eq.s32.totalorder %s9, 1
    %p83 = scmp.ne.s32.totalorder %s78, %s80
    %p84 = scmp.eq.s32.totalorder %s9, 0
    %p85 = por %p83, %p84
    %p86 = scmp.ne.s32.totalorder %s78, %s80
    %p87 = scmp.eq.s32.totalorder %s14, 1
    %p88 = por %p86, %p87
    %p89 = scmp.ne.s32.totalorder %s80, %s81
    %p90 = scmp.eq.s32.totalorder %s14, 0
    %p91 = por %p89, %p90
    %p92 = scmp.ne.s32.totalorder %s80, %s81
    %p93 = scmp.eq.s32.totalorder %s15, 1
    %p94 = por %p92, %p93
    %p96 = scmp.ne.s32.totalorder %s81, %s95
    %p97 = scmp.eq.s32.totalorder %s15, 0
    %p98 = por %p96, %p97
    %s99 = ssub.s32 %s16, %s28
    %s100 = ssub.s32 %s17, %s24
    %s101 = sor.u32 %s99, %s100
    %p102 = scmp.eq.s32.totalorder %s101, 0
    %s104 = sadd.s32 %s103, 1
    %s105 = scalar_select %p102, %s103, %s104
    %p108 = pneg %p102
    %p109 = scmp.eq.s32.totalorder %s9, 1
    %p110 = por %p108, %p109
    %p111 = scmp.ne.s32.totalorder %s103, %s106
    %p112 = scmp.eq.s32.totalorder %s9, 0
    %p113 = por %p111, %p112
    %p114 = scmp.ne.s32.totalorder %s103, %s106
    %p115 = scmp.eq.s32.totalorder %s14, 1
    %p116 = por %p114, %p115
    %p117 = scmp.ne.s32.totalorder %s106, %s107
    %p118 = scmp.eq.s32.totalorder %s14, 0
    %p119 = por %p117, %p118
    %p120 = scmp.ne.s32.totalorder %s106, %s107
    %p121 = scmp.eq.s32.totalorder %s15, 1
    %p122 = por %p120, %p121
    %p124 = scmp.ne.s32.totalorder %s107, %s123
    %p125 = scmp.eq.s32.totalorder %s15, 0
    %p126 = por %p124, %p125
    %p127 = scmp.le.s32.totalorder 1, %s9
    %p128 = scmp.lt.s32.totalorder %s9, 3
    %p129 = pnand %p127, %p128
    %p130 = pneg %p129
    // Predicated region
    $region9: #{up_forward.7} parent=5 // pred_check
      _
    $region10: #{up_forward.7} parent=5 // pred_check_branch
      %132 = sbr.rel (%p129) target = $region12
    $region11: #{up_forward.7} parent=5 // pred_region
      %s133 = ssub.s32 %s9, 1
      // Predicated region
      $region13: #{up_forward.7} parent=11 // pred_check
        %p134 = pneg %p70
      $region14: #{up_forward.7} parent=11 // pred_check_branch
        %136 = sbr.rel (%p134) target = $region16
      $region15: #{up_forward.7} parent=11 // pred_region
        _
      $region16: #{up_forward.7} parent=11 // pred_fallthru
        _
      // Predicated region
      $region17: #{up_forward.7} parent=11 // pred_check
        %p137 = pneg %p91
      $region18: #{up_forward.7} parent=11 // pred_check_branch
        %139 = sbr.rel (%p137) target = $region20
      $region19: #{up_forward.7} parent=11 // pred_region
        _
      $region20: #{up_forward.7} parent=11 // pred_fallthru
        _
    $region12: #{up_forward.7} parent=5 // pred_fallthru
      _
    %p140 = scmp.lt.s32.totalorder %s9, 2
    // Predicated region
    $region21: #{up_forward.7} parent=5 // pred_check
      %p141 = pneg %p140
    $region22: #{up_forward.7} parent=5 // pred_check_branch
      %143 = sbr.rel (%p141) target = $region24
    $region23: #{up_forward.7} parent=5 // pred_region
      // Predicated region
      $region25: #{up_forward.7} parent=23 // pred_check
        %p144 = pneg %p43
      $region26: #{up_forward.7} parent=23 // pred_check_branch
        %146 = sbr.rel (%p144) target = $region28
      $region27: #{up_forward.7} parent=23 // pred_region
        %s147 = smul.u32 2, %s17
        %p148 = scmp.lt.s32.totalorder %s16, 0
        %s149 = scalar_select %p148, %s16, 0
        %p150 = scmp.lt.s32.totalorder %s147, 3
        %s151 = scalar_select %p150, %s147, 3
        %s152 = smul.addr %s149, 4
        %s153 = sadd.s32 %s151, %s152
        %s154 = smul.addr %s153, 8
        %s155 = scalar_lea.vmem %s0, %s154
        %s156 = smul.u32 2, %s17
      $region28: #{up_forward.7} parent=23 // pred_fallthru
        _
    $region24: #{up_forward.7} parent=5 // pred_fallthru
      _
    %p157 = scmp.le.s32.totalorder 1, %s9
    %p158 = scmp.lt.s32.totalorder %s9, 3
    %p159 = pnand %p157, %p158
    %p160 = pneg %p159
    // Predicated region
    $region29: #{up_forward.7} parent=5 // pred_check
      _
    $region30: #{up_forward.7} parent=5 // pred_check_branch
      %162 = sbr.rel (%p159) target = $region32
    $region31: #{up_forward.7} parent=5 // pred_region
      %s163 = ssub.s32 %s9, 1
      %s164 = smul.u32 2, %s19
      %p165 = scmp.lt.s32.totalorder %s18, 0
      %s166 = scalar_select %p165, %s18, 0
      %p167 = scmp.lt.s32.totalorder %s164, 3
      %s168 = scalar_select %p167, %s164, 3
      %s169 = smul.addr %s166, 4
      %s170 = sadd.s32 %s168, %s169
      %s171 = smul.addr %s170, 8
      %s172 = scalar_lea.vmem %s0, %s171
      %p173 = pneg %p49
      %p174 = pneg %p46
      %p175 = pneg %p70
      %p176 = pneg %p67
      %p177 = pneg %p91
      %p178 = pneg %p88
      %p179 = pneg %p119
      %p180 = pneg %p116
      %s181 = smul.u32 2, %s19
      %p182 = scmp.lt.s32.totalorder %s18, 0
      %s183 = scalar_select %p182, %s18, 0
      %p184 = scmp.lt.s32.totalorder %s181, 3
      %s185 = scalar_select %p184, %s181, 3
      %s186 = smul.addr %s183, 4
      %s187 = sadd.s32 %s185, %s186
      %s188 = smul.addr %s187, 8
      %s189 = scalar_lea.vmem %s3, %s188
      %s190 = smul.u32 2, %s19
      %p191 = scmp.lt.s32.totalorder %s18, 0
      %s192 = scalar_select %p191, %s18, 0
      %p193 = scmp.lt.s32.totalorder %s190, 3
      %s194 = scalar_select %p193, %s190, 3
      %s195 = smul.addr %s192, 4
      %s196 = sadd.s32 %s194, %s195
      %s197 = smul.addr %s196, 8
      %s198 = scalar_lea.vmem %s0, %s197
      %s199 = smul.u32 2, %s19
      %s200 = smul.u32 2, %s19
      %p201 = scmp.lt.s32.totalorder %s18, 0
      %s202 = scalar_select %p201, %s18, 0
      %p203 = scmp.lt.s32.totalorder %s200, 3
      %s204 = scalar_select %p203, %s200, 3
      %s205 = smul.addr %s202, 4
      %s206 = sadd.s32 %s204, %s205
      %s207 = smul.addr %s206, 8
      %s208 = scalar_lea.vmem %s3, %s207
      %s209 = smul.u32 2, %s19
      %v210 = vld [vmem:[%s198] sm:$0xff]
      %v211 = vld [vmem:[%s198 + $0x8] sm:$0xff]
      %v212 = vld [vmem:[%s1] sm:$0xff]
      %214 = vset.pattern.permute.xlu0 0
      %215 = vperm.xlu0 %214, %v212
      %v216 = vpop.permute.xlu0 %215
      %v218 = vmul.f32 %v210, %v216
      %v219 = vmul.f32 %v211, %v216
      %v220 = vld [vmem:[%s2] sm:$0xff]
      %222 = vset.pattern.permute.xlu0 0
      %223 = vperm.xlu0 %222, %v220
      %v224 = vpop.permute.xlu0 %223
      %v226 = vadd.f32 %v218, %v224
      %v227 = vadd.f32 %v219, %v224
      %v228 = vmax.f32 %v226, 0.0
      %v229 = vmax.f32 %v227, 0.0
      %v230 = vand.u32 2147483647, %v226
      %v231 = vand.u32 2147483647, %v227
      %v232 = vsub.f32 0.0, %v230
      %v233 = vsub.f32 0.0, %v231
      %v234 = vmul.f32 %v232, 1.442695
      %v235 = vpow.pop %v234
      %v236 = vmul.f32 %v233, 1.442695
      %v237 = vpow.pop %v236
      %v238 = vadd.f32 %v235, 1.0
      %v239 = vlog2.pop %v238
      %v240 = vmul.f32 %v239, 0.6931472
      %v241 = vmul.f32 -0.5, %v235
      %v242 = vadd.f32 %v241, 1.0
      %v243 = vmul.f32 %v242, %v235
      %v244 = vand.u32 2147483647, %v235
      %vm245 = vcmp.lt.f32.partialorder %v244, 0.0004427343
      %v246 = vsel %vm245, %v243, %v240
      %v247 = vadd.f32 %v237, 1.0
      %v248 = vlog2.pop %v247
      %v249 = vmul.f32 %v248, 0.6931472
      %v250 = vmul.f32 -0.5, %v237
      %v251 = vadd.f32 %v250, 1.0
      %v252 = vmul.f32 %v251, %v237
      %v253 = vand.u32 2147483647, %v237
      %vm254 = vcmp.lt.f32.partialorder %v253, 0.0004427343
      %v255 = vsel %vm254, %v252, %v249
      %v256 = vadd.f32 %v228, %v246
      %v257 = vadd.f32 %v229, %v255
      %v258 = vtanh.pop %v256
      %v259 = vtanh.pop %v257
      %v260 = vmul.f32 %v226, %v258
      %v261 = vmul.f32 %v227, %v259
      %262 = vst [vmem:[%s208] sm:$0xff] %v260
      %263 = vst [vmem:[%s208 + $0x8] sm:$0xff] %v261
      %s264 = smul.u32 2, %s19
      %p265 = scmp.lt.s32.totalorder %s18, 0
      %s266 = scalar_select %p265, %s18, 0
      %p267 = scmp.lt.s32.totalorder %s264, 3
      %s268 = scalar_select %p267, %s264, 3
      %s269 = smul.addr %s266, 4
      %s270 = sadd.s32 %s268, %s269
      %s271 = smul.addr %s270, 8
      %s272 = scalar_lea.vmem %s3, %s271
      // Predicated region
      $region33: #{up_forward.7} parent=31 // pred_check
        %p273 = pneg %p116
      $region34: #{up_forward.7} parent=31 // pred_check_branch
        %275 = sbr.rel (%p273) target = $region36
      $region35: #{up_forward.7} parent=31 // pred_region
        %s276 = smul.u32 2, %s19
      $region36: #{up_forward.7} parent=31 // pred_fallthru
        _
    $region32: #{up_forward.7} parent=5 // pred_fallthru
      _
    %p277 = scmp.le.s32.totalorder 2, %s9
    // Predicated region
    $region37: #{up_forward.7} parent=5 // pred_check
      %p278 = pneg %p277
    $region38: #{up_forward.7} parent=5 // pred_check_branch
      %280 = sbr.rel (%p278) target = $region40
    $region39: #{up_forward.7} parent=5 // pred_region
      %s281 = ssub.s32 %s9, 2
      // Predicated region
      $region41: #{up_forward.7} parent=39 // pred_check
        %p282 = pneg %p122
      $region42: #{up_forward.7} parent=39 // pred_check_branch
        %284 = sbr.rel (%p282) target = $region44
      $region43: #{up_forward.7} parent=39 // pred_region
        %s285 = smul.u32 2, %s21
        %p286 = scmp.lt.s32.totalorder %s20, 0
        %s287 = scalar_select %p286, %s20, 0
        %p288 = scmp.lt.s32.totalorder %s285, 3
        %s289 = scalar_select %p288, %s285, 3
        %s290 = smul.addr %s287, 4
        %s291 = sadd.s32 %s289, %s290
        %s292 = smul.addr %s291, 8
        %s293 = scalar_lea.vmem %s3, %s292
      $region44: #{up_forward.7} parent=39 // pred_fallthru
        _
    $region40: #{up_forward.7} parent=5 // pred_fallthru
      _
  $region6: #{up_forward.7} parent=0 // loop_footer
    %s13 = sadd.s32 1, %s9
  $region7: #{up_forward.7} parent=0 // loop_footer_branch
    %8 = sbr.rel target = $region3
  $region8: #{up_forward.7} parent=0 // loop_exit
    _

</llo_original>
